<compile_context>
chip_gen: v6e
topology: v6e:2x2x1
jax: 0.10.0
libtpu: 0.0.40
codegen_flags: <defaults>
</compile_context>

<pallas_src>
import math

import jax
import jax.numpy as jnp
from jax.experimental import pallas as pl
from jax.experimental.pallas import tpu as pltpu


# ----------------------------------------------------------------------------
# Fused kernel factory: LSTM stack (num_layers) + linear_price + LeakyReLU(0.2)
# ----------------------------------------------------------------------------
def _make_fused_kernel(T, B, H, num_layers, neg_slope=0.2):
    """Kernel args: (x_ref, wih_0, whh_0, b_0, ..., w_price, b_price,
                     out_ref, h_scratch)."""

    def kernel(x_ref, *args):
        w_refs = args[: 3 * num_layers]
        wp_ref = args[3 * num_layers]
        bp_ref = args[3 * num_layers + 1]
        out_ref = args[3 * num_layers + 2]
        h_scr = args[3 * num_layers + 3]          # VMEM (T*B, H), time-major

        for layer in range(num_layers):
            w_ih = w_refs[3 * layer][...]          # (IN_l, 4H)
            w_hh = w_refs[3 * layer + 1][...]      # (H, 4H)
            bias = w_refs[3 * layer + 2][...]      # (1, 4H)

            if layer == 0:
                # batch-major input rows: row = b*T + t (PyTorch .view order)
                xin = x_ref[...]                   # (B*T, IN)
            else:
                # previous layer's output, time-major rows: row = t*B + b
                xin = h_scr[...]                   # (T*B, H)

            # Hoisted input projection for the whole sequence (all batches,
            # all timesteps) in one lane-dense MXU matmul; bias broadcast once.
            xp = jnp.dot(xin, w_ih,
                         preferred_element_type=jnp.float32) + bias   # (*, 4H)

            if layer == 0:
                # Exact vreg split at (B,T,4H); per-step middle slice is a
                # cheap sublane extract.
                xp3 = xp.reshape(B, T, 4 * H)

            h = jnp.zeros((B, H), jnp.float32)
            c = jnp.zeros((B, H), jnp.float32)
            for t in range(T):                     # unrolled, batched over B
                if layer == 0:
                    gx = xp3[:, t, :]              # (B, 4H), batch-major layer
                else:
                    gx = xp[t * B:(t + 1) * B, :]  # contiguous (B, 4H)

                gates = gx + jnp.dot(h, w_hh,
                                     preferred_element_type=jnp.float32)
                sg = jax.nn.sigmoid(gates)         # full-width EUP
                th = jnp.tanh(gates)               # full-width EUP
                i_g = sg[:, 0 * H:1 * H]
                f_g = sg[:, 1 * H:2 * H]
                g_g = th[:, 2 * H:3 * H]
                o_g = sg[:, 3 * H:4 * H]
                c = f_g * c + i_g * g_g
                h = o_g * jnp.tanh(c)
                # contiguous time-major store: rows t*B .. t*B+B-1
                h_scr[t * B:(t + 1) * B, :] = h

        # Epilogue: permute last layer's (time-major) output back to PyTorch's
        # batch-major row order (b*T + t) with one strided sublane read per
        # batch, then price head + LeakyReLU(0.2) for all rows at once.
        if B > 1:
            h_bm = jnp.concatenate(
                [h_scr[pl.ds(b, T, stride=B), :] for b in range(B)], axis=0)
        else:
            h_bm = h_scr[...]
        y = jnp.dot(h_bm, wp_ref[...],
                    preferred_element_type=jnp.float32) + bp_ref[...]  # (N, 1)
        out_ref[...] = jnp.where(y >= 0.0, y, neg_slope * y)

    return kernel


# ----------------------------------------------------------------------------
# Wrapper: builds specs and calls the fused kernel (no wrapper layout ops).
# ----------------------------------------------------------------------------
def gtprelifelong_forward(g_emb, lstm_params, w_price, b_price,
                          month_len, hidden_dim):
    N = g_emb.shape[0]
    seq_len = month_len - 1
    if N % seq_len == 0:            # same factorization as the PyTorch .view()
        B, T = N // seq_len, seq_len
    else:
        B, T = 1, N
    num_layers = len(lstm_params)
    H = hidden_dim

    kernel = _make_fused_kernel(T, B, H, num_layers)

    flat_w = []
    in_specs = [pl.BlockSpec(g_emb.shape, lambda i: (0, 0))]
    for (w_ih, w_hh, b) in lstm_params:
        for w in (w_ih, w_hh, b):
            flat_w.append(w)
            in_specs.append(pl.BlockSpec(w.shape, lambda i: (0, 0)))
    for w in (w_price, b_price):
        flat_w.append(w)
        in_specs.append(pl.BlockSpec(w.shape, lambda i: (0, 0)))

    return pl.pallas_call(
        kernel,
        out_shape=jax.ShapeDtypeStruct((N, 1), jnp.float32),
        grid_spec=pltpu.PrefetchScalarGridSpec(
            num_scalar_prefetch=0,
            grid=(1,),
            in_specs=in_specs,
            out_specs=pl.BlockSpec((N, 1), lambda i: (0, 0)),
            scratch_shapes=[pltpu.VMEM((T * B, H), jnp.float32)],
        ),
        compiler_params=pltpu.CompilerParams(
            dimension_semantics=("arbitrary",)),
    )(g_emb, *flat_w)


# ----------------------------------------------------------------------------
# Pure-JAX reference (same math as PyTorch nn.LSTM + nn.Linear + LeakyReLU)
# ----------------------------------------------------------------------------
def _reference_forward(g_emb, lstm_params, w_price, b_price,
                       month_len, hidden_dim):
    N = g_emb.shape[0]
    seq_len = month_len - 1
    if N % seq_len == 0:
        x = g_emb.reshape(-1, seq_len, hidden_dim)
    else:
        x = g_emb.reshape(1, -1, hidden_dim)
    B, T, _ = x.shape
    H = hidden_dim
    for (w_ih, w_hh, b) in lstm_params:
        h = jnp.zeros((B, H), jnp.float32)
        c = jnp.zeros((B, H), jnp.float32)
        ys = []
        for t in range(T):
            gates = x[:, t, :] @ w_ih + h @ w_hh + b
            i_g = jax.nn.sigmoid(gates[:, 0 * H:1 * H])
            f_g = jax.nn.sigmoid(gates[:, 1 * H:2 * H])
            g_g = jnp.tanh(gates[:, 2 * H:3 * H])
            o_g = jax.nn.sigmoid(gates[:, 3 * H:4 * H])
            c = f_g * c + i_g * g_g
            h = o_g * jnp.tanh(c)
            ys.append(h)
        x = jnp.stack(ys, axis=1)                     # (B, T, H)
    out = x.reshape(-1, H)
    y = out @ w_price + b_price
    return jnp.where(y >= 0.0, y, 0.2 * y)


# ----------------------------------------------------------------------------
# Deterministic parameter init (PyTorch-style U(-1/sqrt(H), 1/sqrt(H)))
# ----------------------------------------------------------------------------
def init_params(key, feature_size, hidden_dim, num_layers):
    k = 1.0 / math.sqrt(hidden_dim)
    params = []
    for layer in range(num_layers):
        in_dim = feature_size if layer == 0 else hidden_dim
        key, k1, k2, k3, k4 = jax.random.split(key, 5)
        # stored directly as (IN, 4H) / (H, 4H) for the kernel's x @ W form
        w_ih = jax.random.uniform(k1, (in_dim, 4 * hidden_dim),
                                  jnp.float32, -k, k)
        w_hh = jax.random.uniform(k2, (hidden_dim, 4 * hidden_dim),
                                  jnp.float32, -k, k)
        b_ih = jax.random.uniform(k3, (1, 4 * hidden_dim), jnp.float32, -k, k)
        b_hh = jax.random.uniform(k4, (1, 4 * hidden_dim), jnp.float32, -k, k)
        params.append((w_ih, w_hh, b_ih + b_hh))
    key, k5, k6 = jax.random.split(key, 3)
    w_price = jax.random.uniform(k5, (hidden_dim, 1), jnp.float32, -k, k)
    b_price = jax.random.uniform(k6, (1, 1), jnp.float32, -k, k)
    return params, w_price, b_price


if __name__ == "__main__":
    # net_params-equivalent small config
    hidden_dim = 32       # net_params['out_dim']
    feature_size = 32     # must equal out_dim for the PyTorch forward to work
    month_len = 9         # -> sequence length 8
    num_layers = 2
    batch = 2

    seq_len = month_len - 1
    n_nodes = batch * seq_len                        # divisible by month_len-1

    key = jax.random.PRNGKey(0)
    key, kx = jax.random.split(key)
    # stand-in for the GraphTransformerNet output g_emb (see TODO(synk) above)
    g_emb = jax.random.normal(kx, (n_nodes, hidden_dim), jnp.float32)

    lstm_params, w_price, b_price = init_params(
        key, feature_size, hidden_dim, num_layers)

    out = gtprelifelong_forward(g_emb, lstm_params, w_price, b_price,
                                month_len, hidden_dim)
    out = jax.block_until_ready(out)

    ref = jax.block_until_ready(
        _reference_forward(g_emb, lstm_params, w_price, b_price,
                           month_len, hidden_dim))

    assert out.shape == (n_nodes, 1), out.shape
    assert jnp.all(jnp.isfinite(out))
    assert jnp.allclose(out, ref, atol=5e-3, rtol=5e-3), \
        float(jnp.max(jnp.abs(out - ref)))
    print("KERNEL_OK")
</pallas_src>

<mosaic_0001>
module attributes {stable_mosaic.version = 11 : i64} {
  func.func @kernel(%arg0: i32, %arg1: memref<16x32xf32, #tpu.memory_space<vmem>>, %arg2: memref<32x128xf32, #tpu.memory_space<vmem>>, %arg3: memref<32x128xf32, #tpu.memory_space<vmem>>, %arg4: memref<1x128xf32, #tpu.memory_space<vmem>>, %arg5: memref<32x128xf32, #tpu.memory_space<vmem>>, %arg6: memref<32x128xf32, #tpu.memory_space<vmem>>, %arg7: memref<1x128xf32, #tpu.memory_space<vmem>>, %arg8: memref<32x1xf32, #tpu.memory_space<vmem>>, %arg9: memref<1x1xf32, #tpu.memory_space<vmem>>, %arg10: memref<16x1xf32, #tpu.memory_space<vmem>>, %arg11: memref<16x32xf32, #tpu.memory_space<vmem>>) attributes {dimension_semantics = [#tpu.dimension_semantics<arbitrary>], iteration_bounds = array<i64: 1>, scalar_prefetch = 0 : i64, scratch_operands = 1 : i64, tpu.core_type = #tpu.core_type<tc>, window_params = [{pipeline_mode = #tpu.pipeline_mode<synchronous>, transform_indices = @transform_0, window_bounds = array<i64: 16, 32>}, {pipeline_mode = #tpu.pipeline_mode<synchronous>, transform_indices = @transform_1, window_bounds = array<i64: 32, 128>}, {pipeline_mode = #tpu.pipeline_mode<synchronous>, transform_indices = @transform_2, window_bounds = array<i64: 32, 128>}, {pipeline_mode = #tpu.pipeline_mode<synchronous>, transform_indices = @transform_3, window_bounds = array<i64: 1, 128>}, {pipeline_mode = #tpu.pipeline_mode<synchronous>, transform_indices = @transform_4, window_bounds = array<i64: 32, 128>}, {pipeline_mode = #tpu.pipeline_mode<synchronous>, transform_indices = @transform_5, window_bounds = array<i64: 32, 128>}, {pipeline_mode = #tpu.pipeline_mode<synchronous>, transform_indices = @transform_6, window_bounds = array<i64: 1, 128>}, {pipeline_mode = #tpu.pipeline_mode<synchronous>, transform_indices = @transform_7, window_bounds = array<i64: 32, 1>}, {pipeline_mode = #tpu.pipeline_mode<synchronous>, transform_indices = @transform_8, window_bounds = array<i64: 1, 1>}, {pipeline_mode = #tpu.pipeline_mode<synchronous>, transform_indices = @transform_9, window_bounds = array<i64: 16, 1>}]} {
    %c0 = arith.constant 0 : index
    %c0_0 = arith.constant 0 : index
    %0 = vector.load %arg2[%c0, %c0_0] : memref<32x128xf32, #tpu.memory_space<vmem>>, vector<32x128xf32>
    %c0_1 = arith.constant 0 : index
    %c0_2 = arith.constant 0 : index
    %1 = vector.load %arg3[%c0_1, %c0_2] : memref<32x128xf32, #tpu.memory_space<vmem>>, vector<32x128xf32>
    %c0_3 = arith.constant 0 : index
    %c0_4 = arith.constant 0 : index
    %2 = vector.load %arg4[%c0_3, %c0_4] : memref<1x128xf32, #tpu.memory_space<vmem>>, vector<1x128xf32>
    %c0_5 = arith.constant 0 : index
    %c0_6 = arith.constant 0 : index
    %3 = vector.load %arg1[%c0_5, %c0_6] : memref<16x32xf32, #tpu.memory_space<vmem>>, vector<16x32xf32>
    %cst = arith.constant dense<0.000000e+00> : vector<16x128xf32>
    %4 = tpu.matmul %3, %0, %cst {dimension_numbers = #tpu.dot_dimension_numbers<[1], [0], [0], [1], [0, 0, 1, 1], [], []>} : vector<16x32xf32>, vector<32x128xf32>, vector<16x128xf32> -> vector<16x128xf32>
    %5 = vector.broadcast %2 : vector<1x128xf32> to vector<16x128xf32>
    %6 = arith.addf %4, %5 : vector<16x128xf32>
    %7 = vector.shape_cast %6 : vector<16x128xf32> to vector<2x8x128xf32>
    %cst_7 = arith.constant 0.000000e+00 : f32
    %8 = vector.broadcast %cst_7 : f32 to vector<2x32xf32>
    %cst_8 = arith.constant 0.000000e+00 : f32
    %9 = vector.broadcast %cst_8 : f32 to vector<2x32xf32>
    %10 = vector.extract_strided_slice %7 {offsets = [0, 0, 0], sizes = [2, 1, 128], strides = [1, 1, 1]} : vector<2x8x128xf32> to vector<2x1x128xf32>
    %11 = vector.shape_cast %10 : vector<2x1x128xf32> to vector<2x128xf32>
    %cst_9 = arith.constant dense<0.000000e+00> : vector<2x128xf32>
    %12 = tpu.matmul %8, %1, %cst_9 {dimension_numbers = #tpu.dot_dimension_numbers<[1], [0], [0], [1], [0, 0, 1, 1], [], []>} : vector<2x32xf32>, vector<32x128xf32>, vector<2x128xf32> -> vector<2x128xf32>
    %13 = arith.addf %11, %12 : vector<2x128xf32>
    %14 = arith.negf %13 : vector<2x128xf32>
    %15 = math.exp %14 : vector<2x128xf32>
    %cst_10 = arith.constant 1.000000e+00 : f32
    %16 = vector.broadcast %cst_10 : f32 to vector<2x128xf32>
    %17 = arith.addf %16, %15 : vector<2x128xf32>
    %18 = arith.divf %16, %17 : vector<2x128xf32>
    %19 = math.tanh %13 : vector<2x128xf32>
    %20 = vector.extract_strided_slice %18 {offsets = [0, 0], sizes = [2, 32], strides = [1, 1]} : vector<2x128xf32> to vector<2x32xf32>
    %21 = vector.extract_strided_slice %18 {offsets = [0, 32], sizes = [2, 32], strides = [1, 1]} : vector<2x128xf32> to vector<2x32xf32>
    %22 = vector.extract_strided_slice %19 {offsets = [0, 64], sizes = [2, 32], strides = [1, 1]} : vector<2x128xf32> to vector<2x32xf32>
    %23 = vector.extract_strided_slice %18 {offsets = [0, 96], sizes = [2, 32], strides = [1, 1]} : vector<2x128xf32> to vector<2x32xf32>
    %24 = arith.mulf %21, %9 : vector<2x32xf32>
    %25 = arith.mulf %20, %22 : vector<2x32xf32>
    %26 = arith.addf %24, %25 : vector<2x32xf32>
    %27 = math.tanh %26 : vector<2x32xf32>
    %28 = arith.mulf %23, %27 : vector<2x32xf32>
    %c0_11 = arith.constant 0 : index
    %c0_12 = arith.constant 0 : index
    %29 = vector.load %arg11[%c0_11, %c0_12] : memref<16x32xf32, #tpu.memory_space<vmem>>, vector<2x32xf32>
    tpu.vector_store %arg11[%c0_11, %c0_12], %28 {strides = array<i32>} : memref<16x32xf32, #tpu.memory_space<vmem>>, vector<2x32xf32>,
    %30 = vector.extract_strided_slice %7 {offsets = [0, 1, 0], sizes = [2, 1, 128], strides = [1, 1, 1]} : vector<2x8x128xf32> to vector<2x1x128xf32>
    %31 = vector.shape_cast %30 : vector<2x1x128xf32> to vector<2x128xf32>
    %cst_13 = arith.constant dense<0.000000e+00> : vector<2x128xf32>
    %32 = tpu.matmul %28, %1, %cst_13 {dimension_numbers = #tpu.dot_dimension_numbers<[1], [0], [0], [1], [0, 0, 1, 1], [], []>} : vector<2x32xf32>, vector<32x128xf32>, vector<2x128xf32> -> vector<2x128xf32>
    %33 = arith.addf %31, %32 : vector<2x128xf32>
    %34 = arith.negf %33 : vector<2x128xf32>
    %35 = math.exp %34 : vector<2x128xf32>
    %cst_14 = arith.constant 1.000000e+00 : f32
    %36 = vector.broadcast %cst_14 : f32 to vector<2x128xf32>
    %37 = arith.addf %36, %35 : vector<2x128xf32>
    %38 = arith.divf %36, %37 : vector<2x128xf32>
    %39 = math.tanh %33 : vector<2x128xf32>
    %40 = vector.extract_strided_slice %38 {offsets = [0, 0], sizes = [2, 32], strides = [1, 1]} : vector<2x128xf32> to vector<2x32xf32>
    %41 = vector.extract_strided_slice %38 {offsets = [0, 32], sizes = [2, 32], strides = [1, 1]} : vector<2x128xf32> to vector<2x32xf32>
    %42 = vector.extract_strided_slice %39 {offsets = [0, 64], sizes = [2, 32], strides = [1, 1]} : vector<2x128xf32> to vector<2x32xf32>
    %43 = vector.extract_strided_slice %38 {offsets = [0, 96], sizes = [2, 32], strides = [1, 1]} : vector<2x128xf32> to vector<2x32xf32>
    %44 = arith.mulf %41, %26 : vector<2x32xf32>
    %45 = arith.mulf %40, %42 : vector<2x32xf32>
    %46 = arith.addf %44, %45 : vector<2x32xf32>
    %47 = math.tanh %46 : vector<2x32xf32>
    %48 = arith.mulf %43, %47 : vector<2x32xf32>
    %c2 = arith.constant 2 : index
    %c0_15 = arith.constant 0 : index
    %49 = vector.load %arg11[%c2, %c0_15] : memref<16x32xf32, #tpu.memory_space<vmem>>, vector<2x32xf32>
    tpu.vector_store %arg11[%c2, %c0_15], %48 {strides = array<i32>} : memref<16x32xf32, #tpu.memory_space<vmem>>, vector<2x32xf32>,
    %50 = vector.extract_strided_slice %7 {offsets = [0, 2, 0], sizes = [2, 1, 128], strides = [1, 1, 1]} : vector<2x8x128xf32> to vector<2x1x128xf32>
    %51 = vector.shape_cast %50 : vector<2x1x128xf32> to vector<2x128xf32>
    %cst_16 = arith.constant dense<0.000000e+00> : vector<2x128xf32>
    %52 = tpu.matmul %48, %1, %cst_16 {dimension_numbers = #tpu.dot_dimension_numbers<[1], [0], [0], [1], [0, 0, 1, 1], [], []>} : vector<2x32xf32>, vector<32x128xf32>, vector<2x128xf32> -> vector<2x128xf32>
    %53 = arith.addf %51, %52 : vector<2x128xf32>
    %54 = arith.negf %53 : vector<2x128xf32>
    %55 = math.exp %54 : vector<2x128xf32>
    %cst_17 = arith.constant 1.000000e+00 : f32
    %56 = vector.broadcast %cst_17 : f32 to vector<2x128xf32>
    %57 = arith.addf %56, %55 : vector<2x128xf32>
    %58 = arith.divf %56, %57 : vector<2x128xf32>
    %59 = math.tanh %53 : vector<2x128xf32>
    %60 = vector.extract_strided_slice %58 {offsets = [0, 0], sizes = [2, 32], strides = [1, 1]} : vector<2x128xf32> to vector<2x32xf32>
    %61 = vector.extract_strided_slice %58 {offsets = [0, 32], sizes = [2, 32], strides = [1, 1]} : vector<2x128xf32> to vector<2x32xf32>
    %62 = vector.extract_strided_slice %59 {offsets = [0, 64], sizes = [2, 32], strides = [1, 1]} : vector<2x128xf32> to vector<2x32xf32>
    %63 = vector.extract_strided_slice %58 {offsets = [0, 96], sizes = [2, 32], strides = [1, 1]} : vector<2x128xf32> to vector<2x32xf32>
    %64 = arith.mulf %61, %46 : vector<2x32xf32>
    %65 = arith.mulf %60, %62 : vector<2x32xf32>
    %66 = arith.addf %64, %65 : vector<2x32xf32>
    %67 = math.tanh %66 : vector<2x32xf32>
    %68 = arith.mulf %63, %67 : vector<2x32xf32>
    %c4 = arith.constant 4 : index
    %c0_18 = arith.constant 0 : index
    %69 = vector.load %arg11[%c4, %c0_18] : memref<16x32xf32, #tpu.memory_space<vmem>>, vector<2x32xf32>
    tpu.vector_store %arg11[%c4, %c0_18], %68 {strides = array<i32>} : memref<16x32xf32, #tpu.memory_space<vmem>>, vector<2x32xf32>,
    %70 = vector.extract_strided_slice %7 {offsets = [0, 3, 0], sizes = [2, 1, 128], strides = [1, 1, 1]} : vector<2x8x128xf32> to vector<2x1x128xf32>
    %71 = vector.shape_cast %70 : vector<2x1x128xf32> to vector<2x128xf32>
    %cst_19 = arith.constant dense<0.000000e+00> : vector<2x128xf32>
    %72 = tpu.matmul %68, %1, %cst_19 {dimension_numbers = #tpu.dot_dimension_numbers<[1], [0], [0], [1], [0, 0, 1, 1], [], []>} : vector<2x32xf32>, vector<32x128xf32>, vector<2x128xf32> -> vector<2x128xf32>
    %73 = arith.addf %71, %72 : vector<2x128xf32>
    %74 = arith.negf %73 : vector<2x128xf32>
    %75 = math.exp %74 : vector<2x128xf32>
    %cst_20 = arith.constant 1.000000e+00 : f32
    %76 = vector.broadcast %cst_20 : f32 to vector<2x128xf32>
    %77 = arith.addf %76, %75 : vector<2x128xf32>
    %78 = arith.divf %76, %77 : vector<2x128xf32>
    %79 = math.tanh %73 : vector<2x128xf32>
    %80 = vector.extract_strided_slice %78 {offsets = [0, 0], sizes = [2, 32], strides = [1, 1]} : vector<2x128xf32> to vector<2x32xf32>
    %81 = vector.extract_strided_slice %78 {offsets = [0, 32], sizes = [2, 32], strides = [1, 1]} : vector<2x128xf32> to vector<2x32xf32>
    %82 = vector.extract_strided_slice %79 {offsets = [0, 64], sizes = [2, 32], strides = [1, 1]} : vector<2x128xf32> to vector<2x32xf32>
    %83 = vector.extract_strided_slice %78 {offsets = [0, 96], sizes = [2, 32], strides = [1, 1]} : vector<2x128xf32> to vector<2x32xf32>
    %84 = arith.mulf %81, %66 : vector<2x32xf32>
    %85 = arith.mulf %80, %82 : vector<2x32xf32>
    %86 = arith.addf %84, %85 : vector<2x32xf32>
    %87 = math.tanh %86 : vector<2x32xf32>
    %88 = arith.mulf %83, %87 : vector<2x32xf32>
    %c6 = arith.constant 6 : index
    %c0_21 = arith.constant 0 : index
    %89 = vector.load %arg11[%c6, %c0_21] : memref<16x32xf32, #tpu.memory_space<vmem>>, vector<2x32xf32>
    tpu.vector_store %arg11[%c6, %c0_21], %88 {strides = array<i32>} : memref<16x32xf32, #tpu.memory_space<vmem>>, vector<2x32xf32>,
    %90 = vector.extract_strided_slice %7 {offsets = [0, 4, 0], sizes = [2, 1, 128], strides = [1, 1, 1]} : vector<2x8x128xf32> to vector<2x1x128xf32>
    %91 = vector.shape_cast %90 : vector<2x1x128xf32> to vector<2x128xf32>
    %cst_22 = arith.constant dense<0.000000e+00> : vector<2x128xf32>
    %92 = tpu.matmul %88, %1, %cst_22 {dimension_numbers = #tpu.dot_dimension_numbers<[1], [0], [0], [1], [0, 0, 1, 1], [], []>} : vector<2x32xf32>, vector<32x128xf32>, vector<2x128xf32> -> vector<2x128xf32>
    %93 = arith.addf %91, %92 : vector<2x128xf32>
    %94 = arith.negf %93 : vector<2x128xf32>
    %95 = math.exp %94 : vector<2x128xf32>
    %cst_23 = arith.constant 1.000000e+00 : f32
    %96 = vector.broadcast %cst_23 : f32 to vector<2x128xf32>
    %97 = arith.addf %96, %95 : vector<2x128xf32>
    %98 = arith.divf %96, %97 : vector<2x128xf32>
    %99 = math.tanh %93 : vector<2x128xf32>
    %100 = vector.extract_strided_slice %98 {offsets = [0, 0], sizes = [2, 32], strides = [1, 1]} : vector<2x128xf32> to vector<2x32xf32>
    %101 = vector.extract_strided_slice %98 {offsets = [0, 32], sizes = [2, 32], strides = [1, 1]} : vector<2x128xf32> to vector<2x32xf32>
    %102 = vector.extract_strided_slice %99 {offsets = [0, 64], sizes = [2, 32], strides = [1, 1]} : vector<2x128xf32> to vector<2x32xf32>
    %103 = vector.extract_strided_slice %98 {offsets = [0, 96], sizes = [2, 32], strides = [1, 1]} : vector<2x128xf32> to vector<2x32xf32>
    %104 = arith.mulf %101, %86 : vector<2x32xf32>
    %105 = arith.mulf %100, %102 : vector<2x32xf32>
    %106 = arith.addf %104, %105 : vector<2x32xf32>
    %107 = math.tanh %106 : vector<2x32xf32>
    %108 = arith.mulf %103, %107 : vector<2x32xf32>
    %c8 = arith.constant 8 : index
    %c0_24 = arith.constant 0 : index
    %109 = vector.load %arg11[%c8, %c0_24] : memref<16x32xf32, #tpu.memory_space<vmem>>, vector<2x32xf32>
    tpu.vector_store %arg11[%c8, %c0_24], %108 {strides = array<i32>} : memref<16x32xf32, #tpu.memory_space<vmem>>, vector<2x32xf32>,
    %110 = vector.extract_strided_slice %7 {offsets = [0, 5, 0], sizes = [2, 1, 128], strides = [1, 1, 1]} : vector<2x8x128xf32> to vector<2x1x128xf32>
    %111 = vector.shape_cast %110 : vector<2x1x128xf32> to vector<2x128xf32>
    %cst_25 = arith.constant dense<0.000000e+00> : vector<2x128xf32>
    %112 = tpu.matmul %108, %1, %cst_25 {dimension_numbers = #tpu.dot_dimension_numbers<[1], [0], [0], [1], [0, 0, 1, 1], [], []>} : vector<2x32xf32>, vector<32x128xf32>, vector<2x128xf32> -> vector<2x128xf32>
    %113 = arith.addf %111, %112 : vector<2x128xf32>
    %114 = arith.negf %113 : vector<2x128xf32>
    %115 = math.exp %114 : vector<2x128xf32>
    %cst_26 = arith.constant 1.000000e+00 : f32
    %116 = vector.broadcast %cst_26 : f32 to vector<2x128xf32>
    %117 = arith.addf %116, %115 : vector<2x128xf32>
    %118 = arith.divf %116, %117 : vector<2x128xf32>
    %119 = math.tanh %113 : vector<2x128xf32>
    %120 = vector.extract_strided_slice %118 {offsets = [0, 0], sizes = [2, 32], strides = [1, 1]} : vector<2x128xf32> to vector<2x32xf32>
    %121 = vector.extract_strided_slice %118 {offsets = [0, 32], sizes = [2, 32], strides = [1, 1]} : vector<2x128xf32> to vector<2x32xf32>
    %122 = vector.extract_strided_slice %119 {offsets = [0, 64], sizes = [2, 32], strides = [1, 1]} : vector<2x128xf32> to vector<2x32xf32>
    %123 = vector.extract_strided_slice %118 {offsets = [0, 96], sizes = [2, 32], strides = [1, 1]} : vector<2x128xf32> to vector<2x32xf32>
    %124 = arith.mulf %121, %106 : vector<2x32xf32>
    %125 = arith.mulf %120, %122 : vector<2x32xf32>
    %126 = arith.addf %124, %125 : vector<2x32xf32>
    %127 = math.tanh %126 : vector<2x32xf32>
    %128 = arith.mulf %123, %127 : vector<2x32xf32>
    %c10 = arith.constant 10 : index
    %c0_27 = arith.constant 0 : index
    %129 = vector.load %arg11[%c10, %c0_27] : memref<16x32xf32, #tpu.memory_space<vmem>>, vector<2x32xf32>
    tpu.vector_store %arg11[%c10, %c0_27], %128 {strides = array<i32>} : memref<16x32xf32, #tpu.memory_space<vmem>>, vector<2x32xf32>,
    %130 = vector.extract_strided_slice %7 {offsets = [0, 6, 0], sizes = [2, 1, 128], strides = [1, 1, 1]} : vector<2x8x128xf32> to vector<2x1x128xf32>
    %131 = vector.shape_cast %130 : vector<2x1x128xf32> to vector<2x128xf32>
    %cst_28 = arith.constant dense<0.000000e+00> : vector<2x128xf32>
    %132 = tpu.matmul %128, %1, %cst_28 {dimension_numbers = #tpu.dot_dimension_numbers<[1], [0], [0], [1], [0, 0, 1, 1], [], []>} : vector<2x32xf32>, vector<32x128xf32>, vector<2x128xf32> -> vector<2x128xf32>
    %133 = arith.addf %131, %132 : vector<2x128xf32>
    %134 = arith.negf %133 : vector<2x128xf32>
    %135 = math.exp %134 : vector<2x128xf32>
    %cst_29 = arith.constant 1.000000e+00 : f32
    %136 = vector.broadcast %cst_29 : f32 to vector<2x128xf32>
    %137 = arith.addf %136, %135 : vector<2x128xf32>
    %138 = arith.divf %136, %137 : vector<2x128xf32>
    %139 = math.tanh %133 : vector<2x128xf32>
    %140 = vector.extract_strided_slice %138 {offsets = [0, 0], sizes = [2, 32], strides = [1, 1]} : vector<2x128xf32> to vector<2x32xf32>
    %141 = vector.extract_strided_slice %138 {offsets = [0, 32], sizes = [2, 32], strides = [1, 1]} : vector<2x128xf32> to vector<2x32xf32>
    %142 = vector.extract_strided_slice %139 {offsets = [0, 64], sizes = [2, 32], strides = [1, 1]} : vector<2x128xf32> to vector<2x32xf32>
    %143 = vector.extract_strided_slice %138 {offsets = [0, 96], sizes = [2, 32], strides = [1, 1]} : vector<2x128xf32> to vector<2x32xf32>
    %144 = arith.mulf %141, %126 : vector<2x32xf32>
    %145 = arith.mulf %140, %142 : vector<2x32xf32>
    %146 = arith.addf %144, %145 : vector<2x32xf32>
    %147 = math.tanh %146 : vector<2x32xf32>
    %148 = arith.mulf %143, %147 : vector<2x32xf32>
    %c12 = arith.constant 12 : index
    %c0_30 = arith.constant 0 : index
    %149 = vector.load %arg11[%c12, %c0_30] : memref<16x32xf32, #tpu.memory_space<vmem>>, vector<2x32xf32>
    tpu.vector_store %arg11[%c12, %c0_30], %148 {strides = array<i32>} : memref<16x32xf32, #tpu.memory_space<vmem>>, vector<2x32xf32>,
    %150 = vector.extract_strided_slice %7 {offsets = [0, 7, 0], sizes = [2, 1, 128], strides = [1, 1, 1]} : vector<2x8x128xf32> to vector<2x1x128xf32>
    %151 = vector.shape_cast %150 : vector<2x1x128xf32> to vector<2x128xf32>
    %cst_31 = arith.constant dense<0.000000e+00> : vector<2x128xf32>
    %152 = tpu.matmul %148, %1, %cst_31 {dimension_numbers = #tpu.dot_dimension_numbers<[1], [0], [0], [1], [0, 0, 1, 1], [], []>} : vector<2x32xf32>, vector<32x128xf32>, vector<2x128xf32> -> vector<2x128xf32>
    %153 = arith.addf %151, %152 : vector<2x128xf32>
    %154 = arith.negf %153 : vector<2x128xf32>
    %155 = math.exp %154 : vector<2x128xf32>
    %cst_32 = arith.constant 1.000000e+00 : f32
    %156 = vector.broadcast %cst_32 : f32 to vector<2x128xf32>
    %157 = arith.addf %156, %155 : vector<2x128xf32>
    %158 = arith.divf %156, %157 : vector<2x128xf32>
    %159 = math.tanh %153 : vector<2x128xf32>
    %160 = vector.extract_strided_slice %158 {offsets = [0, 0], sizes = [2, 32], strides = [1, 1]} : vector<2x128xf32> to vector<2x32xf32>
    %161 = vector.extract_strided_slice %158 {offsets = [0, 32], sizes = [2, 32], strides = [1, 1]} : vector<2x128xf32> to vector<2x32xf32>
    %162 = vector.extract_strided_slice %159 {offsets = [0, 64], sizes = [2, 32], strides = [1, 1]} : vector<2x128xf32> to vector<2x32xf32>
    %163 = vector.extract_strided_slice %158 {offsets = [0, 96], sizes = [2, 32], strides = [1, 1]} : vector<2x128xf32> to vector<2x32xf32>
    %164 = arith.mulf %161, %146 : vector<2x32xf32>
    %165 = arith.mulf %160, %162 : vector<2x32xf32>
    %166 = arith.addf %164, %165 : vector<2x32xf32>
    %167 = math.tanh %166 : vector<2x32xf32>
    %168 = arith.mulf %163, %167 : vector<2x32xf32>
    %c14 = arith.constant 14 : index
    %c0_33 = arith.constant 0 : index
    %169 = vector.load %arg11[%c14, %c0_33] : memref<16x32xf32, #tpu.memory_space<vmem>>, vector<2x32xf32>
    tpu.vector_store %arg11[%c14, %c0_33], %168 {strides = array<i32>} : memref<16x32xf32, #tpu.memory_space<vmem>>, vector<2x32xf32>,
    %c0_34 = arith.constant 0 : index
    %c0_35 = arith.constant 0 : index
    %170 = vector.load %arg5[%c0_34, %c0_35] : memref<32x128xf32, #tpu.memory_space<vmem>>, vector<32x128xf32>
    %c0_36 = arith.constant 0 : index
    %c0_37 = arith.constant 0 : index
    %171 = vector.load %arg6[%c0_36, %c0_37] : memref<32x128xf32, #tpu.memory_space<vmem>>, vector<32x128xf32>
    %c0_38 = arith.constant 0 : index
    %c0_39 = arith.constant 0 : index
    %172 = vector.load %arg7[%c0_38, %c0_39] : memref<1x128xf32, #tpu.memory_space<vmem>>, vector<1x128xf32>
    %c0_40 = arith.constant 0 : index
    %c0_41 = arith.constant 0 : index
    %173 = vector.load %arg11[%c0_40, %c0_41] : memref<16x32xf32, #tpu.memory_space<vmem>>, vector<16x32xf32>
    %cst_42 = arith.constant dense<0.000000e+00> : vector<16x128xf32>
    %174 = tpu.matmul %173, %170, %cst_42 {dimension_numbers = #tpu.dot_dimension_numbers<[1], [0], [0], [1], [0, 0, 1, 1], [], []>} : vector<16x32xf32>, vector<32x128xf32>, vector<16x128xf32> -> vector<16x128xf32>
    %175 = vector.broadcast %172 : vector<1x128xf32> to vector<16x128xf32>
    %176 = arith.addf %174, %175 : vector<16x128xf32>
    %cst_43 = arith.constant 0.000000e+00 : f32
    %177 = vector.broadcast %cst_43 : f32 to vector<2x32xf32>
    %cst_44 = arith.constant 0.000000e+00 : f32
    %178 = vector.broadcast %cst_44 : f32 to vector<2x32xf32>
    %179 = vector.extract_strided_slice %176 {offsets = [0, 0], sizes = [2, 128], strides = [1, 1]} : vector<16x128xf32> to vector<2x128xf32>
    %cst_45 = arith.constant dense<0.000000e+00> : vector<2x128xf32>
    %180 = tpu.matmul %177, %171, %cst_45 {dimension_numbers = #tpu.dot_dimension_numbers<[1], [0], [0], [1], [0, 0, 1, 1], [], []>} : vector<2x32xf32>, vector<32x128xf32>, vector<2x128xf32> -> vector<2x128xf32>
    %181 = arith.addf %179, %180 : vector<2x128xf32>
    %182 = arith.negf %181 : vector<2x128xf32>
    %183 = math.exp %182 : vector<2x128xf32>
    %cst_46 = arith.constant 1.000000e+00 : f32
    %184 = vector.broadcast %cst_46 : f32 to vector<2x128xf32>
    %185 = arith.addf %184, %183 : vector<2x128xf32>
    %186 = arith.divf %184, %185 : vector<2x128xf32>
    %187 = math.tanh %181 : vector<2x128xf32>
    %188 = vector.extract_strided_slice %186 {offsets = [0, 0], sizes = [2, 32], strides = [1, 1]} : vector<2x128xf32> to vector<2x32xf32>
    %189 = vector.extract_strided_slice %186 {offsets = [0, 32], sizes = [2, 32], strides = [1, 1]} : vector<2x128xf32> to vector<2x32xf32>
    %190 = vector.extract_strided_slice %187 {offsets = [0, 64], sizes = [2, 32], strides = [1, 1]} : vector<2x128xf32> to vector<2x32xf32>
    %191 = vector.extract_strided_slice %186 {offsets = [0, 96], sizes = [2, 32], strides = [1, 1]} : vector<2x128xf32> to vector<2x32xf32>
    %192 = arith.mulf %189, %178 : vector<2x32xf32>
    %193 = arith.mulf %188, %190 : vector<2x32xf32>
    %194 = arith.addf %192, %193 : vector<2x32xf32>
    %195 = math.tanh %194 : vector<2x32xf32>
    %196 = arith.mulf %191, %195 : vector<2x32xf32>
    %c0_47 = arith.constant 0 : index
    %c0_48 = arith.constant 0 : index
    %197 = vector.load %arg11[%c0_47, %c0_48] : memref<16x32xf32, #tpu.memory_space<vmem>>, vector<2x32xf32>
    tpu.vector_store %arg11[%c0_47, %c0_48], %196 {strides = array<i32>} : memref<16x32xf32, #tpu.memory_space<vmem>>, vector<2x32xf32>,
    %198 = vector.extract_strided_slice %176 {offsets = [2, 0], sizes = [2, 128], strides = [1, 1]} : vector<16x128xf32> to vector<2x128xf32>
    %cst_49 = arith.constant dense<0.000000e+00> : vector<2x128xf32>
    %199 = tpu.matmul %196, %171, %cst_49 {dimension_numbers = #tpu.dot_dimension_numbers<[1], [0], [0], [1], [0, 0, 1, 1], [], []>} : vector<2x32xf32>, vector<32x128xf32>, vector<2x128xf32> -> vector<2x128xf32>
    %200 = arith.addf %198, %199 : vector<2x128xf32>
    %201 = arith.negf %200 : vector<2x128xf32>
    %202 = math.exp %201 : vector<2x128xf32>
    %cst_50 = arith.constant 1.000000e+00 : f32
    %203 = vector.broadcast %cst_50 : f32 to vector<2x128xf32>
    %204 = arith.addf %203, %202 : vector<2x128xf32>
    %205 = arith.divf %203, %204 : vector<2x128xf32>
    %206 = math.tanh %200 : vector<2x128xf32>
    %207 = vector.extract_strided_slice %205 {offsets = [0, 0], sizes = [2, 32], strides = [1, 1]} : vector<2x128xf32> to vector<2x32xf32>
    %208 = vector.extract_strided_slice %205 {offsets = [0, 32], sizes = [2, 32], strides = [1, 1]} : vector<2x128xf32> to vector<2x32xf32>
    %209 = vector.extract_strided_slice %206 {offsets = [0, 64], sizes = [2, 32], strides = [1, 1]} : vector<2x128xf32> to vector<2x32xf32>
    %210 = vector.extract_strided_slice %205 {offsets = [0, 96], sizes = [2, 32], strides = [1, 1]} : vector<2x128xf32> to vector<2x32xf32>
    %211 = arith.mulf %208, %194 : vector<2x32xf32>
    %212 = arith.mulf %207, %209 : vector<2x32xf32>
    %213 = arith.addf %211, %212 : vector<2x32xf32>
    %214 = math.tanh %213 : vector<2x32xf32>
    %215 = arith.mulf %210, %214 : vector<2x32xf32>
    %c2_51 = arith.constant 2 : index
    %c0_52 = arith.constant 0 : index
    %216 = vector.load %arg11[%c2_51, %c0_52] : memref<16x32xf32, #tpu.memory_space<vmem>>, vector<2x32xf32>
    tpu.vector_store %arg11[%c2_51, %c0_52], %215 {strides = array<i32>} : memref<16x32xf32, #tpu.memory_space<vmem>>, vector<2x32xf32>,
    %217 = vector.extract_strided_slice %176 {offsets = [4, 0], sizes = [2, 128], strides = [1, 1]} : vector<16x128xf32> to vector<2x128xf32>
    %cst_53 = arith.constant dense<0.000000e+00> : vector<2x128xf32>
    %218 = tpu.matmul %215, %171, %cst_53 {dimension_numbers = #tpu.dot_dimension_numbers<[1], [0], [0], [1], [0, 0, 1, 1], [], []>} : vector<2x32xf32>, vector<32x128xf32>, vector<2x128xf32> -> vector<2x128xf32>
    %219 = arith.addf %217, %218 : vector<2x128xf32>
    %220 = arith.negf %219 : vector<2x128xf32>
    %221 = math.exp %220 : vector<2x128xf32>
    %cst_54 = arith.constant 1.000000e+00 : f32
    %222 = vector.broadcast %cst_54 : f32 to vector<2x128xf32>
    %223 = arith.addf %222, %221 : vector<2x128xf32>
    %224 = arith.divf %222, %223 : vector<2x128xf32>
    %225 = math.tanh %219 : vector<2x128xf32>
    %226 = vector.extract_strided_slice %224 {offsets = [0, 0], sizes = [2, 32], strides = [1, 1]} : vector<2x128xf32> to vector<2x32xf32>
    %227 = vector.extract_strided_slice %224 {offsets = [0, 32], sizes = [2, 32], strides = [1, 1]} : vector<2x128xf32> to vector<2x32xf32>
    %228 = vector.extract_strided_slice %225 {offsets = [0, 64], sizes = [2, 32], strides = [1, 1]} : vector<2x128xf32> to vector<2x32xf32>
    %229 = vector.extract_strided_slice %224 {offsets = [0, 96], sizes = [2, 32], strides = [1, 1]} : vector<2x128xf32> to vector<2x32xf32>
    %230 = arith.mulf %227, %213 : vector<2x32xf32>
    %231 = arith.mulf %226, %228 : vector<2x32xf32>
    %232 = arith.addf %230, %231 : vector<2x32xf32>
    %233 = math.tanh %232 : vector<2x32xf32>
    %234 = arith.mulf %229, %233 : vector<2x32xf32>
    %c4_55 = arith.constant 4 : index
    %c0_56 = arith.constant 0 : index
    %235 = vector.load %arg11[%c4_55, %c0_56] : memref<16x32xf32, #tpu.memory_space<vmem>>, vector<2x32xf32>
    tpu.vector_store %arg11[%c4_55, %c0_56], %234 {strides = array<i32>} : memref<16x32xf32, #tpu.memory_space<vmem>>, vector<2x32xf32>,
    %236 = vector.extract_strided_slice %176 {offsets = [6, 0], sizes = [2, 128], strides = [1, 1]} : vector<16x128xf32> to vector<2x128xf32>
    %cst_57 = arith.constant dense<0.000000e+00> : vector<2x128xf32>
    %237 = tpu.matmul %234, %171, %cst_57 {dimension_numbers = #tpu.dot_dimension_numbers<[1], [0], [0], [1], [0, 0, 1, 1], [], []>} : vector<2x32xf32>, vector<32x128xf32>, vector<2x128xf32> -> vector<2x128xf32>
    %238 = arith.addf %236, %237 : vector<2x128xf32>
    %239 = arith.negf %238 : vector<2x128xf32>
    %240 = math.exp %239 : vector<2x128xf32>
    %cst_58 = arith.constant 1.000000e+00 : f32
    %241 = vector.broadcast %cst_58 : f32 to vector<2x128xf32>
    %242 = arith.addf %241, %240 : vector<2x128xf32>
    %243 = arith.divf %241, %242 : vector<2x128xf32>
    %244 = math.tanh %238 : vector<2x128xf32>
    %245 = vector.extract_strided_slice %243 {offsets = [0, 0], sizes = [2, 32], strides = [1, 1]} : vector<2x128xf32> to vector<2x32xf32>
    %246 = vector.extract_strided_slice %243 {offsets = [0, 32], sizes = [2, 32], strides = [1, 1]} : vector<2x128xf32> to vector<2x32xf32>
    %247 = vector.extract_strided_slice %244 {offsets = [0, 64], sizes = [2, 32], strides = [1, 1]} : vector<2x128xf32> to vector<2x32xf32>
    %248 = vector.extract_strided_slice %243 {offsets = [0, 96], sizes = [2, 32], strides = [1, 1]} : vector<2x128xf32> to vector<2x32xf32>
    %249 = arith.mulf %246, %232 : vector<2x32xf32>
    %250 = arith.mulf %245, %247 : vector<2x32xf32>
    %251 = arith.addf %249, %250 : vector<2x32xf32>
    %252 = math.tanh %251 : vector<2x32xf32>
    %253 = arith.mulf %248, %252 : vector<2x32xf32>
    %c6_59 = arith.constant 6 : index
    %c0_60 = arith.constant 0 : index
    %254 = vector.load %arg11[%c6_59, %c0_60] : memref<16x32xf32, #tpu.memory_space<vmem>>, vector<2x32xf32>
    tpu.vector_store %arg11[%c6_59, %c0_60], %253 {strides = array<i32>} : memref<16x32xf32, #tpu.memory_space<vmem>>, vector<2x32xf32>,
    %255 = vector.extract_strided_slice %176 {offsets = [8, 0], sizes = [2, 128], strides = [1, 1]} : vector<16x128xf32> to vector<2x128xf32>
    %cst_61 = arith.constant dense<0.000000e+00> : vector<2x128xf32>
    %256 = tpu.matmul %253, %171, %cst_61 {dimension_numbers = #tpu.dot_dimension_numbers<[1], [0], [0], [1], [0, 0, 1, 1], [], []>} : vector<2x32xf32>, vector<32x128xf32>, vector<2x128xf32> -> vector<2x128xf32>
    %257 = arith.addf %255, %256 : vector<2x128xf32>
    %258 = arith.negf %257 : vector<2x128xf32>
    %259 = math.exp %258 : vector<2x128xf32>
    %cst_62 = arith.constant 1.000000e+00 : f32
    %260 = vector.broadcast %cst_62 : f32 to vector<2x128xf32>
    %261 = arith.addf %260, %259 : vector<2x128xf32>
    %262 = arith.divf %260, %261 : vector<2x128xf32>
    %263 = math.tanh %257 : vector<2x128xf32>
    %264 = vector.extract_strided_slice %262 {offsets = [0, 0], sizes = [2, 32], strides = [1, 1]} : vector<2x128xf32> to vector<2x32xf32>
    %265 = vector.extract_strided_slice %262 {offsets = [0, 32], sizes = [2, 32], strides = [1, 1]} : vector<2x128xf32> to vector<2x32xf32>
    %266 = vector.extract_strided_slice %263 {offsets = [0, 64], sizes = [2, 32], strides = [1, 1]} : vector<2x128xf32> to vector<2x32xf32>
    %267 = vector.extract_strided_slice %262 {offsets = [0, 96], sizes = [2, 32], strides = [1, 1]} : vector<2x128xf32> to vector<2x32xf32>
    %268 = arith.mulf %265, %251 : vector<2x32xf32>
    %269 = arith.mulf %264, %266 : vector<2x32xf32>
    %270 = arith.addf %268, %269 : vector<2x32xf32>
    %271 = math.tanh %270 : vector<2x32xf32>
    %272 = arith.mulf %267, %271 : vector<2x32xf32>
    %c8_63 = arith.constant 8 : index
    %c0_64 = arith.constant 0 : index
    %273 = vector.load %arg11[%c8_63, %c0_64] : memref<16x32xf32, #tpu.memory_space<vmem>>, vector<2x32xf32>
    tpu.vector_store %arg11[%c8_63, %c0_64], %272 {strides = array<i32>} : memref<16x32xf32, #tpu.memory_space<vmem>>, vector<2x32xf32>,
    %274 = vector.extract_strided_slice %176 {offsets = [10, 0], sizes = [2, 128], strides = [1, 1]} : vector<16x128xf32> to vector<2x128xf32>
    %cst_65 = arith.constant dense<0.000000e+00> : vector<2x128xf32>
    %275 = tpu.matmul %272, %171, %cst_65 {dimension_numbers = #tpu.dot_dimension_numbers<[1], [0], [0], [1], [0, 0, 1, 1], [], []>} : vector<2x32xf32>, vector<32x128xf32>, vector<2x128xf32> -> vector<2x128xf32>
    %276 = arith.addf %274, %275 : vector<2x128xf32>
    %277 = arith.negf %276 : vector<2x128xf32>
    %278 = math.exp %277 : vector<2x128xf32>
    %cst_66 = arith.constant 1.000000e+00 : f32
    %279 = vector.broadcast %cst_66 : f32 to vector<2x128xf32>
    %280 = arith.addf %279, %278 : vector<2x128xf32>
    %281 = arith.divf %279, %280 : vector<2x128xf32>
    %282 = math.tanh %276 : vector<2x128xf32>
    %283 = vector.extract_strided_slice %281 {offsets = [0, 0], sizes = [2, 32], strides = [1, 1]} : vector<2x128xf32> to vector<2x32xf32>
    %284 = vector.extract_strided_slice %281 {offsets = [0, 32], sizes = [2, 32], strides = [1, 1]} : vector<2x128xf32> to vector<2x32xf32>
    %285 = vector.extract_strided_slice %282 {offsets = [0, 64], sizes = [2, 32], strides = [1, 1]} : vector<2x128xf32> to vector<2x32xf32>
    %286 = vector.extract_strided_slice %281 {offsets = [0, 96], sizes = [2, 32], strides = [1, 1]} : vector<2x128xf32> to vector<2x32xf32>
    %287 = arith.mulf %284, %270 : vector<2x32xf32>
    %288 = arith.mulf %283, %285 : vector<2x32xf32>
    %289 = arith.addf %287, %288 : vector<2x32xf32>
    %290 = math.tanh %289 : vector<2x32xf32>
    %291 = arith.mulf %286, %290 : vector<2x32xf32>
    %c10_67 = arith.constant 10 : index
    %c0_68 = arith.constant 0 : index
    %292 = vector.load %arg11[%c10_67, %c0_68] : memref<16x32xf32, #tpu.memory_space<vmem>>, vector<2x32xf32>
    tpu.vector_store %arg11[%c10_67, %c0_68], %291 {strides = array<i32>} : memref<16x32xf32, #tpu.memory_space<vmem>>, vector<2x32xf32>,
    %293 = vector.extract_strided_slice %176 {offsets = [12, 0], sizes = [2, 128], strides = [1, 1]} : vector<16x128xf32> to vector<2x128xf32>
    %cst_69 = arith.constant dense<0.000000e+00> : vector<2x128xf32>
    %294 = tpu.matmul %291, %171, %cst_69 {dimension_numbers = #tpu.dot_dimension_numbers<[1], [0], [0], [1], [0, 0, 1, 1], [], []>} : vector<2x32xf32>, vector<32x128xf32>, vector<2x128xf32> -> vector<2x128xf32>
    %295 = arith.addf %293, %294 : vector<2x128xf32>
    %296 = arith.negf %295 : vector<2x128xf32>
    %297 = math.exp %296 : vector<2x128xf32>
    %cst_70 = arith.constant 1.000000e+00 : f32
    %298 = vector.broadcast %cst_70 : f32 to vector<2x128xf32>
    %299 = arith.addf %298, %297 : vector<2x128xf32>
    %300 = arith.divf %298, %299 : vector<2x128xf32>
    %301 = math.tanh %295 : vector<2x128xf32>
    %302 = vector.extract_strided_slice %300 {offsets = [0, 0], sizes = [2, 32], strides = [1, 1]} : vector<2x128xf32> to vector<2x32xf32>
    %303 = vector.extract_strided_slice %300 {offsets = [0, 32], sizes = [2, 32], strides = [1, 1]} : vector<2x128xf32> to vector<2x32xf32>
    %304 = vector.extract_strided_slice %301 {offsets = [0, 64], sizes = [2, 32], strides = [1, 1]} : vector<2x128xf32> to vector<2x32xf32>
    %305 = vector.extract_strided_slice %300 {offsets = [0, 96], sizes = [2, 32], strides = [1, 1]} : vector<2x128xf32> to vector<2x32xf32>
    %306 = arith.mulf %303, %289 : vector<2x32xf32>
    %307 = arith.mulf %302, %304 : vector<2x32xf32>
    %308 = arith.addf %306, %307 : vector<2x32xf32>
    %309 = math.tanh %308 : vector<2x32xf32>
    %310 = arith.mulf %305, %309 : vector<2x32xf32>
    %c12_71 = arith.constant 12 : index
    %c0_72 = arith.constant 0 : index
    %311 = vector.load %arg11[%c12_71, %c0_72] : memref<16x32xf32, #tpu.memory_space<vmem>>, vector<2x32xf32>
    tpu.vector_store %arg11[%c12_71, %c0_72], %310 {strides = array<i32>} : memref<16x32xf32, #tpu.memory_space<vmem>>, vector<2x32xf32>,
    %312 = vector.extract_strided_slice %176 {offsets = [14, 0], sizes = [2, 128], strides = [1, 1]} : vector<16x128xf32> to vector<2x128xf32>
    %cst_73 = arith.constant dense<0.000000e+00> : vector<2x128xf32>
    %313 = tpu.matmul %310, %171, %cst_73 {dimension_numbers = #tpu.dot_dimension_numbers<[1], [0], [0], [1], [0, 0, 1, 1], [], []>} : vector<2x32xf32>, vector<32x128xf32>, vector<2x128xf32> -> vector<2x128xf32>
    %314 = arith.addf %312, %313 : vector<2x128xf32>
    %315 = arith.negf %314 : vector<2x128xf32>
    %316 = math.exp %315 : vector<2x128xf32>
    %cst_74 = arith.constant 1.000000e+00 : f32
    %317 = vector.broadcast %cst_74 : f32 to vector<2x128xf32>
    %318 = arith.addf %317, %316 : vector<2x128xf32>
    %319 = arith.divf %317, %318 : vector<2x128xf32>
    %320 = math.tanh %314 : vector<2x128xf32>
    %321 = vector.extract_strided_slice %319 {offsets = [0, 0], sizes = [2, 32], strides = [1, 1]} : vector<2x128xf32> to vector<2x32xf32>
    %322 = vector.extract_strided_slice %319 {offsets = [0, 32], sizes = [2, 32], strides = [1, 1]} : vector<2x128xf32> to vector<2x32xf32>
    %323 = vector.extract_strided_slice %320 {offsets = [0, 64], sizes = [2, 32], strides = [1, 1]} : vector<2x128xf32> to vector<2x32xf32>
    %324 = vector.extract_strided_slice %319 {offsets = [0, 96], sizes = [2, 32], strides = [1, 1]} : vector<2x128xf32> to vector<2x32xf32>
    %325 = arith.mulf %322, %308 : vector<2x32xf32>
    %326 = arith.mulf %321, %323 : vector<2x32xf32>
    %327 = arith.addf %325, %326 : vector<2x32xf32>
    %328 = math.tanh %327 : vector<2x32xf32>
    %329 = arith.mulf %324, %328 : vector<2x32xf32>
    %c14_75 = arith.constant 14 : index
    %c0_76 = arith.constant 0 : index
    %330 = vector.load %arg11[%c14_75, %c0_76] : memref<16x32xf32, #tpu.memory_space<vmem>>, vector<2x32xf32>
    tpu.vector_store %arg11[%c14_75, %c0_76], %329 {strides = array<i32>} : memref<16x32xf32, #tpu.memory_space<vmem>>, vector<2x32xf32>,
    %c0_77 = arith.constant 0 : index
    %c0_78 = arith.constant 0 : index
    %331 = tpu.strided_load %arg11[%c0_77, %c0_78] {strides = array<i32: 2, 1>} : memref<16x32xf32, #tpu.memory_space<vmem>>, vector<8x32xf32>
    %c1 = arith.constant 1 : index
    %c0_79 = arith.constant 0 : index
    %332 = tpu.strided_load %arg11[%c1, %c0_79] {strides = array<i32: 2, 1>} : memref<16x32xf32, #tpu.memory_space<vmem>>, vector<8x32xf32>
    %333 = tpu.concatenate %331, %332 in 0 : vector<8x32xf32>, vector<8x32xf32> -> vector<16x32xf32>
    %c0_80 = arith.constant 0 : index
    %c0_81 = arith.constant 0 : index
    %334 = vector.load %arg8[%c0_80, %c0_81] : memref<32x1xf32, #tpu.memory_space<vmem>>, vector<32x1xf32>
    %cst_82 = arith.constant dense<0.000000e+00> : vector<16x1xf32>
    %335 = tpu.matmul %333, %334, %cst_82 {dimension_numbers = #tpu.dot_dimension_numbers<[1], [0], [0], [1], [0, 0, 1, 1], [], []>} : vector<16x32xf32>, vector<32x1xf32>, vector<16x1xf32> -> vector<16x1xf32>
    %c0_83 = arith.constant 0 : index
    %c0_84 = arith.constant 0 : index
    %336 = vector.load %arg9[%c0_83, %c0_84] : memref<1x1xf32, #tpu.memory_space<vmem>>, vector<1x1xf32>
    %337 = vector.broadcast %336 : vector<1x1xf32> to vector<16x1xf32>
    %338 = arith.addf %335, %337 : vector<16x1xf32>
    %cst_85 = arith.constant 0.000000e+00 : f32
    %339 = vector.broadcast %cst_85 : f32 to vector<16x1xf32>
    %340 = arith.cmpf oge, %338, %339 : vector<16x1xf32>
    %cst_86 = arith.constant 2.000000e-01 : f32
    %341 = vector.broadcast %cst_86 : f32 to vector<16x1xf32>
    %342 = arith.mulf %341, %338 : vector<16x1xf32>
    %343 = arith.select %340, %338, %342 : vector<16x1xi1>, vector<16x1xf32>
    %c0_87 = arith.constant 0 : index
    %c0_88 = arith.constant 0 : index
    %344 = vector.load %arg10[%c0_87, %c0_88] : memref<16x1xf32, #tpu.memory_space<vmem>>, vector<16x1xf32>
    tpu.vector_store %arg10[%c0_87, %c0_88], %343 {strides = array<i32>} : memref<16x1xf32, #tpu.memory_space<vmem>>, vector<16x1xf32>,
    return
  }
  func.func @transform_0(%arg0: i32) -> (i32, i32) {
    %c0_i32 = arith.constant 0 : i32
    %c0_i32_0 = arith.constant 0 : i32
    %c0_i32_1 = arith.constant 0 : i32
    return %c0_i32, %c0_i32_0 : i32, i32
  }
  func.func @transform_1(%arg0: i32) -> (i32, i32) {
    %c0_i32 = arith.constant 0 : i32
    %c0_i32_0 = arith.constant 0 : i32
    %c0_i32_1 = arith.constant 0 : i32
    return %c0_i32, %c0_i32_0 : i32, i32
  }
  func.func @transform_2(%arg0: i32) -> (i32, i32) {
    %c0_i32 = arith.constant 0 : i32
    %c0_i32_0 = arith.constant 0 : i32
    %c0_i32_1 = arith.constant 0 : i32
    return %c0_i32, %c0_i32_0 : i32, i32
  }
  func.func @transform_3(%arg0: i32) -> (i32, i32) {
    %c0_i32 = arith.constant 0 : i32
    %c0_i32_0 = arith.constant 0 : i32
    %c0_i32_1 = arith.constant 0 : i32
    return %c0_i32, %c0_i32_0 : i32, i32
  }
  func.func @transform_4(%arg0: i32) -> (i32, i32) {
    %c0_i32 = arith.constant 0 : i32
    %c0_i32_0 = arith.constant 0 : i32
    %c0_i32_1 = arith.constant 0 : i32
    return %c0_i32, %c0_i32_0 : i32, i32
  }
  func.func @transform_5(%arg0: i32) -> (i32, i32) {
    %c0_i32 = arith.constant 0 : i32
    %c0_i32_0 = arith.constant 0 : i32
    %c0_i32_1 = arith.constant 0 : i32
    return %c0_i32, %c0_i32_0 : i32, i32
  }
  func.func @transform_6(%arg0: i32) -> (i32, i32) {
    %c0_i32 = arith.constant 0 : i32
    %c0_i32_0 = arith.constant 0 : i32
    %c0_i32_1 = arith.constant 0 : i32
    return %c0_i32, %c0_i32_0 : i32, i32
  }
  func.func @transform_7(%arg0: i32) -> (i32, i32) {
    %c0_i32 = arith.constant 0 : i32
    %c0_i32_0 = arith.constant 0 : i32
    %c0_i32_1 = arith.constant 0 : i32
    return %c0_i32, %c0_i32_0 : i32, i32
  }
  func.func @transform_8(%arg0: i32) -> (i32, i32) {
    %c0_i32 = arith.constant 0 : i32
    %c0_i32_0 = arith.constant 0 : i32
    %c0_i32_1 = arith.constant 0 : i32
    return %c0_i32, %c0_i32_0 : i32, i32
  }
  func.func @transform_9(%arg0: i32) -> (i32, i32) {
    %c0_i32 = arith.constant 0 : i32
    %c0_i32_0 = arith.constant 0 : i32
    %c0_i32_1 = arith.constant 0 : i32
    return %c0_i32, %c0_i32_0 : i32, i32
  }
}

</mosaic_0001>

<llo_original>
// kernel: tpu_custom_call.1
$region0: #{tpu_custom_call.1}
  #allocation0 [shape = 'u32[]', space=smem, size = 0x4, offset = 0x4, fixed_abs, tag = 'smem constant byte address 0x4 - core index']
  #allocation1 [shape = 'u32[144,128]{1,0:T(1,128)}', space=vmem, size = 0x12000, scoped, tag = 'internal scratch']
  #allocation2 [shape = 'f32[16,32]{1,0:T(8,128)}', space=vmem, size = 0x2000, scoped, tag = 'scratch operand']
  #allocation3 [shape = 'f32[1,1]{1,0:T(1,128)S(1)}', space=vmem, size = 0x200, scoped, tag = 'scoped memory for tpu_custom_call.1']
  %s0 = inlined_call_operand.hbm [shape: f32[16,32], index: 0, kind: input, shape index: {}]
  %s1 = inlined_call_operand.vmem [shape: f32[32,128], index: 1, kind: input, shape index: {}]
  %s2 = inlined_call_operand.hbm [shape: f32[32,128], index: 2, kind: input, shape index: {}]
  %s3 = inlined_call_operand.vmem [shape: f32[1,128], index: 3, kind: input, shape index: {}]
  %s4 = inlined_call_operand.hbm [shape: f32[32,128], index: 4, kind: input, shape index: {}]
  %s5 = inlined_call_operand.hbm [shape: f32[32,128], index: 5, kind: input, shape index: {}]
  %s6 = inlined_call_operand.vmem [shape: f32[1,128], index: 6, kind: input, shape index: {}]
  %s7 = inlined_call_operand.vmem [shape: f32[32,1], index: 7, kind: input, shape index: {}]
  %s8 = inlined_call_operand.<no memory space> [shape: f32[1,1], index: 8, kind: input, shape index: {}]
  %s9 = inlined_call_operand.vmem [shape: f32[16,1], index: 9, kind: output, shape index: {}]
  %s10 = sld [smem:[#allocation0]]
  $region62: #{tpu_custom_call.1} parent=0
    _
  %s12 = ssub.s32 1, %s10
  %s13 = scalar_select 0, %s12, %s10
  %v14 = vstv %s8
  %15 = vst [vmem:[#allocation3] sm:$0x1] %v14
  $region1: #{tpu_custom_call.1} parent=0
    #allocation4 [shape = 'u8[8192]{0}', space=vmem, size = 0x2000, scoped, tag = 'input window, operand 0, single buffered']
    #allocation5 [shape = 's32[1]{0}', space=sflag, size = 0x4, scoped, tag = 'scoped memory for tpu_custom_call.1']
    #allocation6 [shape = 'u8[16384]{0}', space=vmem, size = 0x4000, scoped, tag = 'input window, operand 2, single buffered']
    #allocation7 [shape = 's32[1]{0}', space=sflag, size = 0x4, scoped, tag = 'scoped memory for tpu_custom_call.1']
    #allocation8 [shape = 'u8[16384]{0}', space=vmem, size = 0x4000, scoped, tag = 'input window, operand 4, single buffered']
    #allocation9 [shape = 'u8[16384]{0}', space=vmem, size = 0x4000, scoped, tag = 'input window, operand 5, single buffered']
    #allocation10 [shape = 's32[1]{0}', space=sflag, size = 0x4, scoped, tag = 'scoped memory for tpu_custom_call.1']
    %16 = vsyncpa [#allocation5], 0
    %17 = vsyncpa [#allocation7], 0
    %18 = vsyncpa [#allocation10], 0
    // Predicated region
    $region2: #{tpu_custom_call.1} parent=1 // pred_check
      _
    $region3: #{tpu_custom_call.1} parent=1 // pred_check_branch
      %20 = sbr.rel (0) target = $region5
    $region4: #{tpu_custom_call.1} parent=1 // pred_region
      %s22 = ssub.s32 256, 256
      %23 = vsyncadd [#allocation5], %s22
      %s24 = sshll.u32 [#allocation4], 4
      %s25 = int_to_ptr.vmem [resolvable:$true] %s24
      %30 = dma.hbm_to_vmem [thread:$0]  %s0, 256, %s25, [#allocation5], 128, 128, 8
    $region5: #{tpu_custom_call.1} parent=1 // pred_fallthru
      _
    // Predicated region
    $region6: #{tpu_custom_call.1} parent=1 // pred_check
      _
    $region7: #{tpu_custom_call.1} parent=1 // pred_check_branch
      %32 = sbr.rel (0) target = $region9
    $region8: #{tpu_custom_call.1} parent=1 // pred_region
      _
    $region9: #{tpu_custom_call.1} parent=1 // pred_fallthru
      _
    // Predicated region
    $region10: #{tpu_custom_call.1} parent=1 // pred_check
      _
    $region11: #{tpu_custom_call.1} parent=1 // pred_check_branch
      %34 = sbr.rel (0) target = $region13
    $region12: #{tpu_custom_call.1} parent=1 // pred_region
      %s36 = ssub.s32 512, 512
      %37 = vsyncadd [#allocation7], %s36
      %s38 = sshll.u32 [#allocation6], 4
      %s39 = int_to_ptr.vmem [resolvable:$true] %s38
      %44 = dma.hbm_to_vmem [thread:$0]  %s2, 512, %s39, [#allocation7], 128, 128, 8
    $region13: #{tpu_custom_call.1} parent=1 // pred_fallthru
      _
    // Predicated region
    $region14: #{tpu_custom_call.1} parent=1 // pred_check
      _
    $region15: #{tpu_custom_call.1} parent=1 // pred_check_branch
      %46 = sbr.rel (0) target = $region17
    $region16: #{tpu_custom_call.1} parent=1 // pred_region
      _
    $region17: #{tpu_custom_call.1} parent=1 // pred_fallthru
      _
    // Predicated region
    $region18: #{tpu_custom_call.1} parent=1 // pred_check
      _
    $region19: #{tpu_custom_call.1} parent=1 // pred_check_branch
      %48 = sbr.rel (0) target = $region21
    $region20: #{tpu_custom_call.1} parent=1 // pred_region
      %s50 = ssub.s32 512, 512
      %51 = vsyncadd [#allocation7], %s50
      %s52 = sshll.u32 [#allocation8], 4
      %s53 = int_to_ptr.vmem [resolvable:$true] %s52
      %58 = dma.hbm_to_vmem [thread:$0]  %s4, 512, %s53, [#allocation7], 128, 128, 8
    $region21: #{tpu_custom_call.1} parent=1 // pred_fallthru
      _
    // Predicated region
    $region22: #{tpu_custom_call.1} parent=1 // pred_check
      _
    $region23: #{tpu_custom_call.1} parent=1 // pred_check_branch
      %60 = sbr.rel (0) target = $region25
    $region24: #{tpu_custom_call.1} parent=1 // pred_region
      %s62 = ssub.s32 512, 512
      %63 = vsyncadd [#allocation10], %s62
      %s64 = sshll.u32 [#allocation9], 4
      %s65 = int_to_ptr.vmem [resolvable:$true] %s64
      %70 = dma.hbm_to_vmem [thread:$0]  %s5, 512, %s65, [#allocation10], 128, 128, 8
    $region25: #{tpu_custom_call.1} parent=1 // pred_fallthru
      _
    // Predicated region
    $region26: #{tpu_custom_call.1} parent=1 // pred_check
      _
    $region27: #{tpu_custom_call.1} parent=1 // pred_check_branch
      %72 = sbr.rel (0) target = $region29
    $region28: #{tpu_custom_call.1} parent=1 // pred_region
      _
    $region29: #{tpu_custom_call.1} parent=1 // pred_fallthru
      _
    // Predicated region
    $region30: #{tpu_custom_call.1} parent=1 // pred_check
      _
    $region31: #{tpu_custom_call.1} parent=1 // pred_check_branch
      %74 = sbr.rel (0) target = $region33
    $region32: #{tpu_custom_call.1} parent=1 // pred_region
      _
    $region33: #{tpu_custom_call.1} parent=1 // pred_fallthru
      _
    // Predicated region
    $region34: #{tpu_custom_call.1} parent=1 // pred_check
      _
    $region35: #{tpu_custom_call.1} parent=1 // pred_check_branch
      %76 = sbr.rel (0) target = $region37
    $region36: #{tpu_custom_call.1} parent=1 // pred_region
      _
    $region37: #{tpu_custom_call.1} parent=1 // pred_fallthru
      _
    // Predicated region
    $region38: #{tpu_custom_call.1} parent=1 // pred_check
      _
    $region39: #{tpu_custom_call.1} parent=1 // pred_check_branch
      %78 = sbr.rel (0) target = $region41
    $region40: #{tpu_custom_call.1} parent=1 // pred_region
      %79 = dma.done [#allocation5], 256
    $region41: #{tpu_custom_call.1} parent=1 // pred_fallthru
      _
    // Predicated region
    $region42: #{tpu_custom_call.1} parent=1 // pred_check
      _
    $region43: #{tpu_custom_call.1} parent=1 // pred_check_branch
      %81 = sbr.rel (0) target = $region45
    $region44: #{tpu_custom_call.1} parent=1 // pred_region
      %82 = dma.done [#allocation7], 512
    $region45: #{tpu_custom_call.1} parent=1 // pred_fallthru
      _
    // Predicated region
    $region46: #{tpu_custom_call.1} parent=1 // pred_check
      _
    $region47: #{tpu_custom_call.1} parent=1 // pred_check_branch
      %84 = sbr.rel (0) target = $region49
    $region48: #{tpu_custom_call.1} parent=1 // pred_region
      %85 = dma.done [#allocation7], 512
    $region49: #{tpu_custom_call.1} parent=1 // pred_fallthru
      _
    // Predicated region
    $region50: #{tpu_custom_call.1} parent=1 // pred_check
      _
    $region51: #{tpu_custom_call.1} parent=1 // pred_check_branch
      %87 = sbr.rel (0) target = $region53
    $region52: #{tpu_custom_call.1} parent=1 // pred_region
      %88 = dma.done [#allocation10], 512
    $region53: #{tpu_custom_call.1} parent=1 // pred_fallthru
      _
    %v89 = vld [vmem:[%s1] sm:$0xff]
    %v90 = vld [vmem:[%s1 + $0x8] sm:$0xff]
    %v91 = vld [vmem:[%s1 + $0x10] sm:$0xff]
    %v92 = vld [vmem:[%s1 + $0x18] sm:$0xff]
    %v93 = vld [vmem:[#allocation6] sm:$0xff]
    %v94 = vld [vmem:[#allocation6 + $0x8] sm:$0xff]
    %v95 = vld [vmem:[#allocation6 + $0x10] sm:$0xff]
    %v96 = vld [vmem:[#allocation6 + $0x18] sm:$0xff]
    %v97 = vld [vmem:[%s3] sm:$0x1]
    %v98 = vld [vmem:[#allocation4] sm:$0xff]
    %v99 = vld [vmem:[#allocation4 + $0x8] sm:$0xff]
    %v101 = vlaneseq
    %v102 = vshrl.u32 %v101, 7
    %v103 = vsub.s32 0, %v102
    %v104 = vrot.slane %v97, %v103
    %vm106 = vcmask 261120
    %v108 = vsel %vm106, %v98, 0
    %v111 = vsel %vm106, %v99, 0
    %113 = vmatprep.subr.mxu0 0.0
    %114 = vmatpush1.msra.mxu0 0.0
    %115 = vmatprep.subr.mxu0 0.0
    %116 = vmatpush1.msra.mxu0 0.0
    %117 = vmatprep.subr.mxu0 0.0
    %118 = vmatpush1.msra.mxu0 0.0
    %119 = vmatprep.subr.mxu0 0.0
    %120 = vmatpush1.msra.mxu0 0.0
    %121 = vmatprep.subr.mxu0 0.0
    %122 = vmatpush1.msra.mxu0 0.0
    %123 = vmatprep.subr.mxu0 0.0
    %124 = vmatpush1.msra.mxu0 0.0
    %125 = vmatprep.subr.mxu0 0.0
    %126 = vmatpush1.msra.mxu0 0.0
    %127 = vmatprep.subr.mxu0 0.0
    %128 = vmatpush1.msra.mxu0 0.0
    %129 = vmatprep.subr.mxu0 0.0
    %130 = vmatpush1.msra.mxu0 0.0
    %131 = vmatprep.subr.mxu0 0.0
    %132 = vmatpush1.msra.mxu0 0.0
    %133 = vmatprep.subr.mxu0 0.0
    %134 = vmatpush1.msra.mxu0 0.0
    %135 = vmatprep.subr.mxu0 0.0
    %136 = vmatpush1.msra.mxu0 0.0
    %137 = vmatprep.subr.mxu0 0.0
    %138 = vmatpush1.msra.mxu0 %v92
    %139 = vmatprep.subr.mxu0 0.0
    %140 = vmatpush1.msra.mxu0 %v91
    %141 = vmatprep.subr.mxu0 0.0
    %142 = vmatpush1.msra.mxu0 %v90
    %143 = vmatprep.subr.mxu0 0.0
    %144 = vmatpush1.msra.mxu0 %v89
    %145 = vmatprep.subr.mxu0 0.0
    %146 = vmatpush2.msra.mxu0 0.0
    %147 = vmatprep.subr.mxu0 0.0
    %148 = vmatpush2.msra.mxu0 0.0
    %149 = vmatprep.subr.mxu0 0.0
    %150 = vmatpush2.msra.mxu0 0.0
    %151 = vmatprep.subr.mxu0 0.0
    %152 = vmatpush2.msra.mxu0 0.0
    %153 = vmatprep.subr.mxu0 0.0
    %154 = vmatpush2.msra.mxu0 0.0
    %155 = vmatprep.subr.mxu0 0.0
    %156 = vmatpush2.msra.mxu0 0.0
    %157 = vmatprep.subr.mxu0 0.0
    %158 = vmatpush2.msra.mxu0 0.0
    %159 = vmatprep.subr.mxu0 0.0
    %160 = vmatpush2.msra.mxu0 0.0
    %161 = vmatprep.subr.mxu0 0.0
    %162 = vmatpush2.msra.mxu0 0.0
    %163 = vmatprep.subr.mxu0 0.0
    %164 = vmatpush2.msra.mxu0 0.0
    %165 = vmatprep.subr.mxu0 0.0
    %166 = vmatpush2.msra.mxu0 0.0
    %167 = vmatprep.subr.mxu0 0.0
    %168 = vmatpush2.msra.mxu0 0.0
    %169 = vmatprep.subr.mxu0 0.0
    %170 = vmatpush2.msra.mxu0 0.0
    %171 = vmatprep.subr.mxu0 0.0
    %172 = vmatpush2.msra.mxu0 0.0
    %173 = vmatprep.subr.mxu0 0.0
    %174 = vmatpush2.msra.mxu0 0.0
    %175 = vmatprep.subr.mxu0 0.0
    %176 = vmatpush2.msra.mxu0 0.0
    %177 = vmatprep.mubr.f32.mxu0 0.0
    %178 = vmatmul.mubr.f32.gmra.mxu0 %v108
    %v179 = vpop.f32.mrf.mxu0
    %v180 = vadd.f32 %v104, %v179
    %v181 = vpop.f32.mrf.mxu0
    %182 = vmatprep.mubr.f32.mxu0 0.0
    %183 = vmatmul.mubr.f32.gmra.mxu0 %v111
    %v184 = vpop.f32.mrf.mxu0
    %v185 = vadd.f32 %v104, %v184
    %v186 = vpop.f32.mrf.mxu0
    %187 = vdwg.mxu0
    %v189 = vsel %vm106, 0.0, 0
    %191 = vmatprep.subr.mxu0 0.0
    %192 = vmatpush1.msra.mxu0 0.0
    %193 = vmatprep.subr.mxu0 0.0
    %194 = vmatpush1.msra.mxu0 0.0
    %195 = vmatprep.subr.mxu0 0.0
    %196 = vmatpush1.msra.mxu0 0.0
    %197 = vmatprep.subr.mxu0 0.0
    %198 = vmatpush1.msra.mxu0 0.0
    %199 = vmatprep.subr.mxu0 0.0
    %200 = vmatpush1.msra.mxu0 0.0
    %201 = vmatprep.subr.mxu0 0.0
    %202 = vmatpush1.msra.mxu0 0.0
    %203 = vmatprep.subr.mxu0 0.0
    %204 = vmatpush1.msra.mxu0 0.0
    %205 = vmatprep.subr.mxu0 0.0
    %206 = vmatpush1.msra.mxu0 0.0
    %207 = vmatprep.subr.mxu0 0.0
    %208 = vmatpush1.msra.mxu0 0.0
    %209 = vmatprep.subr.mxu0 0.0
    %210 = vmatpush1.msra.mxu0 0.0
    %211 = vmatprep.subr.mxu0 0.0
    %212 = vmatpush1.msra.mxu0 0.0
    %213 = vmatprep.subr.mxu0 0.0
    %214 = vmatpush1.msra.mxu0 0.0
    %215 = vmatprep.subr.mxu0 0.0
    %216 = vmatpush1.msra.mxu0 %v96
    %217 = vmatprep.subr.mxu0 0.0
    %218 = vmatpush1.msra.mxu0 %v95
    %219 = vmatprep.subr.mxu0 0.0
    %220 = vmatpush1.msra.mxu0 %v94
    %221 = vmatprep.subr.mxu0 0.0
    %222 = vmatpush1.msra.mxu0 %v93
    %223 = vmatprep.subr.mxu0 0.0
    %224 = vmatpush2.msra.mxu0 0.0
    %225 = vmatprep.subr.mxu0 0.0
    %226 = vmatpush2.msra.mxu0 0.0
    %227 = vmatprep.subr.mxu0 0.0
    %228 = vmatpush2.msra.mxu0 0.0
    %229 = vmatprep.subr.mxu0 0.0
    %230 = vmatpush2.msra.mxu0 0.0
    %231 = vmatprep.subr.mxu0 0.0
    %232 = vmatpush2.msra.mxu0 0.0
    %233 = vmatprep.subr.mxu0 0.0
    %234 = vmatpush2.msra.mxu0 0.0
    %235 = vmatprep.subr.mxu0 0.0
    %236 = vmatpush2.msra.mxu0 0.0
    %237 = vmatprep.subr.mxu0 0.0
    %238 = vmatpush2.msra.mxu0 0.0
    %239 = vmatprep.subr.mxu0 0.0
    %240 = vmatpush2.msra.mxu0 0.0
    %241 = vmatprep.subr.mxu0 0.0
    %242 = vmatpush2.msra.mxu0 0.0
    %243 = vmatprep.subr.mxu0 0.0
    %244 = vmatpush2.msra.mxu0 0.0
    %245 = vmatprep.subr.mxu0 0.0
    %246 = vmatpush2.msra.mxu0 0.0
    %247 = vmatprep.subr.mxu0 0.0
    %248 = vmatpush2.msra.mxu0 0.0
    %249 = vmatprep.subr.mxu0 0.0
    %250 = vmatpush2.msra.mxu0 0.0
    %251 = vmatprep.subr.mxu0 0.0
    %252 = vmatpush2.msra.mxu0 0.0
    %253 = vmatprep.subr.mxu0 0.0
    %254 = vmatpush2.msra.mxu0 0.0
    %255 = vmatprep.mubr.f32.mxu0 0.0
    %256 = vmatmul.mubr.f32.gmra.mxu0 %v189
    %v257 = vpop.f32.mrf.mxu0
    %v258 = vadd.f32 0.0, %v257
    %v259 = vpop.f32.mrf.mxu0
    %260 = vdwg.mxu0
    %v262 = vrot.slane %v258, 1
    %v265 = vadd.f32 %v180, %v258
    %v266 = vadd.f32 %v185, %v262
    %v267 = vxor.u32 %v265, 2147483648
    %v268 = vxor.u32 %v266, 2147483648
    %v269 = vmul.f32 %v267, 1.442695
    %v270 = vpow.pop %v269
    %v271 = vmul.f32 %v268, 1.442695
    %v272 = vpow.pop %v271
    %v273 = vadd.f32 %v270, 1.0
    %v274 = vadd.f32 %v272, 1.0
    %v275 = vrcp.pop %v273
    %v276 = vmul.f32 1.0, %v275
    %v277 = vrcp.pop %v274
    %v278 = vmul.f32 1.0, %v277
    %v279 = vtanh.pop %v265
    %v280 = vtanh.pop %v266
    %v281 = vmul.f32 %v276, 0.0
    %v282 = vmul.f32 %v278, 0.0
    %285 = vrot.lane.b32.xlu0 %v279, 64
    %v286 = vpop.permute.xlu0 %285
    %287 = vrot.lane.b32.xlu0 %v280, 64
    %v288 = vpop.permute.xlu0 %287
    %v291 = vmul.f32 %v276, %v286
    %v292 = vmul.f32 %v278, %v288
    %295 = vrot.lane.b32.xlu0 %v291, 32
    %v296 = vpop.permute.xlu0 %295
    %297 = vrot.lane.b32.xlu0 %v292, 32
    %v298 = vpop.permute.xlu0 %297
    %v301 = vadd.f32 %v281, %v296
    %v302 = vadd.f32 %v282, %v298
    %v303 = vtanh.pop %v301
    %v304 = vtanh.pop %v302
    %307 = vrot.lane.b32.xlu0 %v303, 64
    %v308 = vpop.permute.xlu0 %307
    %309 = vrot.lane.b32.xlu0 %v304, 64
    %v310 = vpop.permute.xlu0 %309
    %v313 = vmul.f32 %v276, %v308
    %v314 = vmul.f32 %v278, %v310
    %v317 = vrot.slane %v314, 7
    %vm318 = vcmask 1041409
    %v319 = vsel %vm318, %v317, %v313
    %320 = vrot.lane.b32.xlu0 %v319, 32
    %v321 = vpop.permute.xlu0 %320
    %vm323 = vcmask 254976
    %324 = vst.msk [vmem:[#allocation2] sm:$0x3] %vm323, %v321
    %v325 = vsel %vm106, %v321, 0
    %327 = vmatprep.subr.mxu0 0.0
    %328 = vmatpush1.msra.mxu0 0.0
    %329 = vmatprep.subr.mxu0 0.0
    %330 = vmatpush1.msra.mxu0 0.0
    %331 = vmatprep.subr.mxu0 0.0
    %332 = vmatpush1.msra.mxu0 0.0
    %333 = vmatprep.subr.mxu0 0.0
    %334 = vmatpush1.msra.mxu0 0.0
    %335 = vmatprep.subr.mxu0 0.0
    %336 = vmatpush1.msra.mxu0 0.0
    %337 = vmatprep.subr.mxu0 0.0
    %338 = vmatpush1.msra.mxu0 0.0
    %339 = vmatprep.subr.mxu0 0.0
    %340 = vmatpush1.msra.mxu0 0.0
    %341 = vmatprep.subr.mxu0 0.0
    %342 = vmatpush1.msra.mxu0 0.0
    %343 = vmatprep.subr.mxu0 0.0
    %344 = vmatpush1.msra.mxu0 0.0
    %345 = vmatprep.subr.mxu0 0.0
    %346 = vmatpush1.msra.mxu0 0.0
    %347 = vmatprep.subr.mxu0 0.0
    %348 = vmatpush1.msra.mxu0 0.0
    %349 = vmatprep.subr.mxu0 0.0
    %350 = vmatpush1.msra.mxu0 0.0
    %351 = vmatprep.subr.mxu0 0.0
    %352 = vmatpush1.msra.mxu0 %v96
    %353 = vmatprep.subr.mxu0 0.0
    %354 = vmatpush1.msra.mxu0 %v95
    %355 = vmatprep.subr.mxu0 0.0
    %356 = vmatpush1.msra.mxu0 %v94
    %357 = vmatprep.subr.mxu0 0.0
    %358 = vmatpush1.msra.mxu0 %v93
    %359 = vmatprep.subr.mxu0 0.0
    %360 = vmatpush2.msra.mxu0 0.0
    %361 = vmatprep.subr.mxu0 0.0
    %362 = vmatpush2.msra.mxu0 0.0
    %363 = vmatprep.subr.mxu0 0.0
    %364 = vmatpush2.msra.mxu0 0.0
    %365 = vmatprep.subr.mxu0 0.0
    %366 = vmatpush2.msra.mxu0 0.0
    %367 = vmatprep.subr.mxu0 0.0
    %368 = vmatpush2.msra.mxu0 0.0
    %369 = vmatprep.subr.mxu0 0.0
    %370 = vmatpush2.msra.mxu0 0.0
    %371 = vmatprep.subr.mxu0 0.0
    %372 = vmatpush2.msra.mxu0 0.0
    %373 = vmatprep.subr.mxu0 0.0
    %374 = vmatpush2.msra.mxu0 0.0
    %375 = vmatprep.subr.mxu0 0.0
    %376 = vmatpush2.msra.mxu0 0.0
    %377 = vmatprep.subr.mxu0 0.0
    %378 = vmatpush2.msra.mxu0 0.0
    %379 = vmatprep.subr.mxu0 0.0
    %380 = vmatpush2.msra.mxu0 0.0
    %381 = vmatprep.subr.mxu0 0.0
    %382 = vmatpush2.msra.mxu0 0.0
    %383 = vmatprep.subr.mxu0 0.0
    %384 = vmatpush2.msra.mxu0 0.0
    %385 = vmatprep.subr.mxu0 0.0
    %386 = vmatpush2.msra.mxu0 0.0
    %387 = vmatprep.subr.mxu0 0.0
    %388 = vmatpush2.msra.mxu0 0.0
    %389 = vmatprep.subr.mxu0 0.0
    %390 = vmatpush2.msra.mxu0 0.0
    %391 = vmatprep.mubr.f32.mxu0 0.0
    %392 = vmatmul.mubr.f32.gmra.mxu0 %v325
    %v393 = vpop.f32.mrf.mxu0
    %v394 = vadd.f32 0.0, %v393
    %v395 = vpop.f32.mrf.mxu0
    %396 = vdwg.mxu0
    %v398 = vrot.slane %v394, 7
    %v401 = vadd.f32 %v180, %v398
    %v402 = vadd.f32 %v185, %v394
    %v403 = vxor.u32 %v401, 2147483648
    %v404 = vxor.u32 %v402, 2147483648
    %v405 = vmul.f32 %v403, 1.442695
    %v406 = vpow.pop %v405
    %v407 = vmul.f32 %v404, 1.442695
    %v408 = vpow.pop %v407
    %v409 = vadd.f32 %v406, 1.0
    %v410 = vadd.f32 %v408, 1.0
    %v411 = vrcp.pop %v409
    %v412 = vmul.f32 1.0, %v411
    %v413 = vrcp.pop %v410
    %v414 = vmul.f32 1.0, %v413
    %v415 = vtanh.pop %v401
    %v416 = vtanh.pop %v402
    %v419 = vrot.slane %v301, 7
    %v420 = vrot.slane %v302, 7
    %v423 = vmul.f32 %v412, %v419
    %v424 = vmul.f32 %v414, %v420
    %427 = vrot.lane.b32.xlu0 %v415, 64
    %v428 = vpop.permute.xlu0 %427
    %429 = vrot.lane.b32.xlu0 %v416, 64
    %v430 = vpop.permute.xlu0 %429
    %v433 = vmul.f32 %v412, %v428
    %v434 = vmul.f32 %v414, %v430
    %437 = vrot.lane.b32.xlu0 %v433, 32
    %v438 = vpop.permute.xlu0 %437
    %439 = vrot.lane.b32.xlu0 %v434, 32
    %v440 = vpop.permute.xlu0 %439
    %v443 = vadd.f32 %v423, %v438
    %v444 = vadd.f32 %v424, %v440
    %v445 = vtanh.pop %v443
    %v446 = vtanh.pop %v444
    %449 = vrot.lane.b32.xlu0 %v445, 64
    %v450 = vpop.permute.xlu0 %449
    %451 = vrot.lane.b32.xlu0 %v446, 64
    %v452 = vpop.permute.xlu0 %451
    %v455 = vmul.f32 %v412, %v450
    %v456 = vmul.f32 %v414, %v452
    %v459 = vrot.slane %v456, 7
    %vm460 = vcmask 1042434
    %v461 = vsel %vm460, %v459, %v455
    %462 = vrot.lane.b32.xlu0 %v461, 32
    %v463 = vpop.permute.xlu0 %462
    %vm465 = vcmask 256001
    %466 = vst.msk [vmem:[#allocation2 + $0x1] sm:$0x6] %vm465, %v463
    %v467 = vrot.slane %v455, 1
    %v468 = vsel %vm318, %v456, %v467
    %469 = vrot.lane.b32.xlu0 %v468, 32
    %v470 = vpop.permute.xlu0 %469
    %v471 = vsel %vm106, %v470, 0
    %473 = vmatprep.subr.mxu0 0.0
    %474 = vmatpush1.msra.mxu0 0.0
    %475 = vmatprep.subr.mxu0 0.0
    %476 = vmatpush1.msra.mxu0 0.0
    %477 = vmatprep.subr.mxu0 0.0
    %478 = vmatpush1.msra.mxu0 0.0
    %479 = vmatprep.subr.mxu0 0.0
    %480 = vmatpush1.msra.mxu0 0.0
    %481 = vmatprep.subr.mxu0 0.0
    %482 = vmatpush1.msra.mxu0 0.0
    %483 = vmatprep.subr.mxu0 0.0
    %484 = vmatpush1.msra.mxu0 0.0
    %485 = vmatprep.subr.mxu0 0.0
    %486 = vmatpush1.msra.mxu0 0.0
    %487 = vmatprep.subr.mxu0 0.0
    %488 = vmatpush1.msra.mxu0 0.0
    %489 = vmatprep.subr.mxu0 0.0
    %490 = vmatpush1.msra.mxu0 0.0
    %491 = vmatprep.subr.mxu0 0.0
    %492 = vmatpush1.msra.mxu0 0.0
    %493 = vmatprep.subr.mxu0 0.0
    %494 = vmatpush1.msra.mxu0 0.0
    %495 = vmatprep.subr.mxu0 0.0
    %496 = vmatpush1.msra.mxu0 0.0
    %497 = vmatprep.subr.mxu0 0.0
    %498 = vmatpush1.msra.mxu0 %v96
    %499 = vmatprep.subr.mxu0 0.0
    %500 = vmatpush1.msra.mxu0 %v95
    %501 = vmatprep.subr.mxu0 0.0
    %502 = vmatpush1.msra.mxu0 %v94
    %503 = vmatprep.subr.mxu0 0.0
    %504 = vmatpush1.msra.mxu0 %v93
    %505 = vmatprep.subr.mxu0 0.0
    %506 = vmatpush2.msra.mxu0 0.0
    %507 = vmatprep.subr.mxu0 0.0
    %508 = vmatpush2.msra.mxu0 0.0
    %509 = vmatprep.subr.mxu0 0.0
    %510 = vmatpush2.msra.mxu0 0.0
    %511 = vmatprep.subr.mxu0 0.0
    %512 = vmatpush2.msra.mxu0 0.0
    %513 = vmatprep.subr.mxu0 0.0
    %514 = vmatpush2.msra.mxu0 0.0
    %515 = vmatprep.subr.mxu0 0.0
    %516 = vmatpush2.msra.mxu0 0.0
    %517 = vmatprep.subr.mxu0 0.0
    %518 = vmatpush2.msra.mxu0 0.0
    %519 = vmatprep.subr.mxu0 0.0
    %520 = vmatpush2.msra.mxu0 0.0
    %521 = vmatprep.subr.mxu0 0.0
    %522 = vmatpush2.msra.mxu0 0.0
    %523 = vmatprep.subr.mxu0 0.0
    %524 = vmatpush2.msra.mxu0 0.0
    %525 = vmatprep.subr.mxu0 0.0
    %526 = vmatpush2.msra.mxu0 0.0
    %527 = vmatprep.subr.mxu0 0.0
    %528 = vmatpush2.msra.mxu0 0.0
    %529 = vmatprep.subr.mxu0 0.0
    %530 = vmatpush2.msra.mxu0 0.0
    %531 = vmatprep.subr.mxu0 0.0
    %532 = vmatpush2.msra.mxu0 0.0
    %533 = vmatprep.subr.mxu0 0.0
    %534 = vmatpush2.msra.mxu0 0.0
    %535 = vmatprep.subr.mxu0 0.0
    %536 = vmatpush2.msra.mxu0 0.0
    %537 = vmatprep.mubr.f32.mxu0 0.0
    %538 = vmatmul.mubr.f32.gmra.mxu0 %v471
    %v539 = vpop.f32.mrf.mxu0
    %v540 = vadd.f32 0.0, %v539
    %v541 = vpop.f32.mrf.mxu0
    %542 = vdwg.mxu0
    %v544 = vrot.slane %v540, 6
    %v545 = vrot.slane %v540, 7
    %v548 = vadd.f32 %v180, %v544
    %v549 = vadd.f32 %v185, %v545
    %v550 = vxor.u32 %v548, 2147483648
    %v551 = vxor.u32 %v549, 2147483648
    %v552 = vmul.f32 %v550, 1.442695
    %v553 = vpow.pop %v552
    %v554 = vmul.f32 %v551, 1.442695
    %v555 = vpow.pop %v554
    %v556 = vadd.f32 %v553, 1.0
    %v557 = vadd.f32 %v555, 1.0
    %v558 = vrcp.pop %v556
    %v559 = vmul.f32 1.0, %v558
    %v560 = vrcp.pop %v557
    %v561 = vmul.f32 1.0, %v560
    %v562 = vtanh.pop %v548
    %v563 = vtanh.pop %v549
    %v566 = vrot.slane %v443, 7
    %v567 = vrot.slane %v444, 7
    %v570 = vmul.f32 %v559, %v566
    %v571 = vmul.f32 %v561, %v567
    %574 = vrot.lane.b32.xlu0 %v562, 64
    %v575 = vpop.permute.xlu0 %574
    %576 = vrot.lane.b32.xlu0 %v563, 64
    %v577 = vpop.permute.xlu0 %576
    %v580 = vmul.f32 %v559, %v575
    %v581 = vmul.f32 %v561, %v577
    %584 = vrot.lane.b32.xlu0 %v580, 32
    %v585 = vpop.permute.xlu0 %584
    %586 = vrot.lane.b32.xlu0 %v581, 32
    %v587 = vpop.permute.xlu0 %586
    %v590 = vadd.f32 %v570, %v585
    %v591 = vadd.f32 %v571, %v587
    %v592 = vtanh.pop %v590
    %v593 = vtanh.pop %v591
    %596 = vrot.lane.b32.xlu0 %v592, 64
    %v597 = vpop.permute.xlu0 %596
    %598 = vrot.lane.b32.xlu0 %v593, 64
    %v599 = vpop.permute.xlu0 %598
    %v602 = vmul.f32 %v559, %v597
    %v603 = vmul.f32 %v561, %v599
    %v606 = vrot.slane %v603, 7
    %vm607 = vcmask 1043459
    %v608 = vsel %vm607, %v606, %v602
    %609 = vrot.lane.b32.xlu0 %v608, 32
    %v610 = vpop.permute.xlu0 %609
    %vm612 = vcmask 257026
    %613 = vst.msk [vmem:[#allocation2 + $0x2] sm:$0xc] %vm612, %v610
    %v614 = vrot.slane %v602, 2
    %v615 = vrot.slane %v603, 1
    %v616 = vsel %vm318, %v615, %v614
    %617 = vrot.lane.b32.xlu0 %v616, 32
    %v618 = vpop.permute.xlu0 %617
    %v619 = vsel %vm106, %v618, 0
    %621 = vmatprep.subr.mxu0 0.0
    %622 = vmatpush1.msra.mxu0 0.0
    %623 = vmatprep.subr.mxu0 0.0
    %624 = vmatpush1.msra.mxu0 0.0
    %625 = vmatprep.subr.mxu0 0.0
    %626 = vmatpush1.msra.mxu0 0.0
    %627 = vmatprep.subr.mxu0 0.0
    %628 = vmatpush1.msra.mxu0 0.0
    %629 = vmatprep.subr.mxu0 0.0
    %630 = vmatpush1.msra.mxu0 0.0
    %631 = vmatprep.subr.mxu0 0.0
    %632 = vmatpush1.msra.mxu0 0.0
    %633 = vmatprep.subr.mxu0 0.0
    %634 = vmatpush1.msra.mxu0 0.0
    %635 = vmatprep.subr.mxu0 0.0
    %636 = vmatpush1.msra.mxu0 0.0
    %637 = vmatprep.subr.mxu0 0.0
    %638 = vmatpush1.msra.mxu0 0.0
    %639 = vmatprep.subr.mxu0 0.0
    %640 = vmatpush1.msra.mxu0 0.0
    %641 = vmatprep.subr.mxu0 0.0
    %642 = vmatpush1.msra.mxu0 0.0
    %643 = vmatprep.subr.mxu0 0.0
    %644 = vmatpush1.msra.mxu0 0.0
    %645 = vmatprep.subr.mxu0 0.0
    %646 = vmatpush1.msra.mxu0 %v96
    %647 = vmatprep.subr.mxu0 0.0
    %648 = vmatpush1.msra.mxu0 %v95
    %649 = vmatprep.subr.mxu0 0.0
    %650 = vmatpush1.msra.mxu0 %v94
    %651 = vmatprep.subr.mxu0 0.0
    %652 = vmatpush1.msra.mxu0 %v93
    %653 = vmatprep.subr.mxu0 0.0
    %654 = vmatpush2.msra.mxu0 0.0
    %655 = vmatprep.subr.mxu0 0.0
    %656 = vmatpush2.msra.mxu0 0.0
    %657 = vmatprep.subr.mxu0 0.0
    %658 = vmatpush2.msra.mxu0 0.0
    %659 = vmatprep.subr.mxu0 0.0
    %660 = vmatpush2.msra.mxu0 0.0
    %661 = vmatprep.subr.mxu0 0.0
    %662 = vmatpush2.msra.mxu0 0.0
    %663 = vmatprep.subr.mxu0 0.0
    %664 = vmatpush2.msra.mxu0 0.0
    %665 = vmatprep.subr.mxu0 0.0
    %666 = vmatpush2.msra.mxu0 0.0
    %667 = vmatprep.subr.mxu0 0.0
    %668 = vmatpush2.msra.mxu0 0.0
    %669 = vmatprep.subr.mxu0 0.0
    %670 = vmatpush2.msra.mxu0 0.0
    %671 = vmatprep.subr.mxu0 0.0
    %672 = vmatpush2.msra.mxu0 0.0
    %673 = vmatprep.subr.mxu0 0.0
    %674 = vmatpush2.msra.mxu0 0.0
    %675 = vmatprep.subr.mxu0 0.0
    %676 = vmatpush2.msra.mxu0 0.0
    %677 = vmatprep.subr.mxu0 0.0
    %678 = vmatpush2.msra.mxu0 0.0
    %679 = vmatprep.subr.mxu0 0.0
    %680 = vmatpush2.msra.mxu0 0.0
    %681 = vmatprep.subr.mxu0 0.0
    %682 = vmatpush2.msra.mxu0 0.0
    %683 = vmatprep.subr.mxu0 0.0
    %684 = vmatpush2.msra.mxu0 0.0
    %685 = vmatprep.mubr.f32.mxu0 0.0
    %686 = vmatmul.mubr.f32.gmra.mxu0 %v619
    %v687 = vpop.f32.mrf.mxu0
    %v688 = vadd.f32 0.0, %v687
    %v689 = vpop.f32.mrf.mxu0
    %690 = vdwg.mxu0
    %v692 = vrot.slane %v688, 5
    %v693 = vrot.slane %v688, 6
    %v696 = vadd.f32 %v180, %v692
    %v697 = vadd.f32 %v185, %v693
    %v698 = vxor.u32 %v696, 2147483648
    %v699 = vxor.u32 %v697, 2147483648
    %v700 = vmul.f32 %v698, 1.442695
    %v701 = vpow.pop %v700
    %v702 = vmul.f32 %v699, 1.442695
    %v703 = vpow.pop %v702
    %v704 = vadd.f32 %v701, 1.0
    %v705 = vadd.f32 %v703, 1.0
    %v706 = vrcp.pop %v704
    %v707 = vmul.f32 1.0, %v706
    %v708 = vrcp.pop %v705
    %v709 = vmul.f32 1.0, %v708
    %v710 = vtanh.pop %v696
    %v711 = vtanh.pop %v697
    %v714 = vrot.slane %v590, 7
    %v715 = vrot.slane %v591, 7
    %v718 = vmul.f32 %v707, %v714
    %v719 = vmul.f32 %v709, %v715
    %722 = vrot.lane.b32.xlu0 %v710, 64
    %v723 = vpop.permute.xlu0 %722
    %724 = vrot.lane.b32.xlu0 %v711, 64
    %v725 = vpop.permute.xlu0 %724
    %v728 = vmul.f32 %v707, %v723
    %v729 = vmul.f32 %v709, %v725
    %732 = vrot.lane.b32.xlu0 %v728, 32
    %v733 = vpop.permute.xlu0 %732
    %734 = vrot.lane.b32.xlu0 %v729, 32
    %v735 = vpop.permute.xlu0 %734
    %v738 = vadd.f32 %v718, %v733
    %v739 = vadd.f32 %v719, %v735
    %v740 = vtanh.pop %v738
    %v741 = vtanh.pop %v739
    %744 = vrot.lane.b32.xlu0 %v740, 64
    %v745 = vpop.permute.xlu0 %744
    %746 = vrot.lane.b32.xlu0 %v741, 64
    %v747 = vpop.permute.xlu0 %746
    %v750 = vmul.f32 %v707, %v745
    %v751 = vmul.f32 %v709, %v747
    %v754 = vrot.slane %v751, 7
    %vm755 = vcmask 1044484
    %v756 = vsel %vm755, %v754, %v750
    %757 = vrot.lane.b32.xlu0 %v756, 32
    %v758 = vpop.permute.xlu0 %757
    %vm760 = vcmask 258051
    %761 = vst.msk [vmem:[#allocation2 + $0x3] sm:$0x18] %vm760, %v758
    %v762 = vrot.slane %v750, 3
    %v763 = vrot.slane %v751, 2
    %v764 = vsel %vm318, %v763, %v762
    %765 = vrot.lane.b32.xlu0 %v764, 32
    %v766 = vpop.permute.xlu0 %765
    %v767 = vsel %vm106, %v766, 0
    %769 = vmatprep.subr.mxu0 0.0
    %770 = vmatpush1.msra.mxu0 0.0
    %771 = vmatprep.subr.mxu0 0.0
    %772 = vmatpush1.msra.mxu0 0.0
    %773 = vmatprep.subr.mxu0 0.0
    %774 = vmatpush1.msra.mxu0 0.0
    %775 = vmatprep.subr.mxu0 0.0
    %776 = vmatpush1.msra.mxu0 0.0
    %777 = vmatprep.subr.mxu0 0.0
    %778 = vmatpush1.msra.mxu0 0.0
    %779 = vmatprep.subr.mxu0 0.0
    %780 = vmatpush1.msra.mxu0 0.0
    %781 = vmatprep.subr.mxu0 0.0
    %782 = vmatpush1.msra.mxu0 0.0
    %783 = vmatprep.subr.mxu0 0.0
    %784 = vmatpush1.msra.mxu0 0.0
    %785 = vmatprep.subr.mxu0 0.0
    %786 = vmatpush1.msra.mxu0 0.0
    %787 = vmatprep.subr.mxu0 0.0
    %788 = vmatpush1.msra.mxu0 0.0
    %789 = vmatprep.subr.mxu0 0.0
    %790 = vmatpush1.msra.mxu0 0.0
    %791 = vmatprep.subr.mxu0 0.0
    %792 = vmatpush1.msra.mxu0 0.0
    %793 = vmatprep.subr.mxu0 0.0
    %794 = vmatpush1.msra.mxu0 %v96
    %795 = vmatprep.subr.mxu0 0.0
    %796 = vmatpush1.msra.mxu0 %v95
    %797 = vmatprep.subr.mxu0 0.0
    %798 = vmatpush1.msra.mxu0 %v94
    %799 = vmatprep.subr.mxu0 0.0
    %800 = vmatpush1.msra.mxu0 %v93
    %801 = vmatprep.subr.mxu0 0.0
    %802 = vmatpush2.msra.mxu0 0.0
    %803 = vmatprep.subr.mxu0 0.0
    %804 = vmatpush2.msra.mxu0 0.0
    %805 = vmatprep.subr.mxu0 0.0
    %806 = vmatpush2.msra.mxu0 0.0
    %807 = vmatprep.subr.mxu0 0.0
    %808 = vmatpush2.msra.mxu0 0.0
    %809 = vmatprep.subr.mxu0 0.0
    %810 = vmatpush2.msra.mxu0 0.0
    %811 = vmatprep.subr.mxu0 0.0
    %812 = vmatpush2.msra.mxu0 0.0
    %813 = vmatprep.subr.mxu0 0.0
    %814 = vmatpush2.msra.mxu0 0.0
    %815 = vmatprep.subr.mxu0 0.0
    %816 = vmatpush2.msra.mxu0 0.0
    %817 = vmatprep.subr.mxu0 0.0
    %818 = vmatpush2.msra.mxu0 0.0
    %819 = vmatprep.subr.mxu0 0.0
    %820 = vmatpush2.msra.mxu0 0.0
    %821 = vmatprep.subr.mxu0 0.0
    %822 = vmatpush2.msra.mxu0 0.0
    %823 = vmatprep.subr.mxu0 0.0
    %824 = vmatpush2.msra.mxu0 0.0
    %825 = vmatprep.subr.mxu0 0.0
    %826 = vmatpush2.msra.mxu0 0.0
    %827 = vmatprep.subr.mxu0 0.0
    %828 = vmatpush2.msra.mxu0 0.0
    %829 = vmatprep.subr.mxu0 0.0
    %830 = vmatpush2.msra.mxu0 0.0
    %831 = vmatprep.subr.mxu0 0.0
    %832 = vmatpush2.msra.mxu0 0.0
    %833 = vmatprep.mubr.f32.mxu0 0.0
    %834 = vmatmul.mubr.f32.gmra.mxu0 %v767
    %v835 = vpop.f32.mrf.mxu0
    %v836 = vadd.f32 0.0, %v835
    %v837 = vpop.f32.mrf.mxu0
    %838 = vdwg.mxu0
    %v840 = vrot.slane %v836, 4
    %v841 = vrot.slane %v836, 5
    %v844 = vadd.f32 %v180, %v840
    %v845 = vadd.f32 %v185, %v841
    %v846 = vxor.u32 %v844, 2147483648
    %v847 = vxor.u32 %v845, 2147483648
    %v848 = vmul.f32 %v846, 1.442695
    %v849 = vpow.pop %v848
    %v850 = vmul.f32 %v847, 1.442695
    %v851 = vpow.pop %v850
    %v852 = vadd.f32 %v849, 1.0
    %v853 = vadd.f32 %v851, 1.0
    %v854 = vrcp.pop %v852
    %v855 = vmul.f32 1.0, %v854
    %v856 = vrcp.pop %v853
    %v857 = vmul.f32 1.0, %v856
    %v858 = vtanh.pop %v844
    %v859 = vtanh.pop %v845
    %v862 = vrot.slane %v738, 7
    %v863 = vrot.slane %v739, 7
    %v866 = vmul.f32 %v855, %v862
    %v867 = vmul.f32 %v857, %v863
    %870 = vrot.lane.b32.xlu0 %v858, 64
    %v871 = vpop.permute.xlu0 %870
    %872 = vrot.lane.b32.xlu0 %v859, 64
    %v873 = vpop.permute.xlu0 %872
    %v876 = vmul.f32 %v855, %v871
    %v877 = vmul.f32 %v857, %v873
    %880 = vrot.lane.b32.xlu0 %v876, 32
    %v881 = vpop.permute.xlu0 %880
    %882 = vrot.lane.b32.xlu0 %v877, 32
    %v883 = vpop.permute.xlu0 %882
    %v886 = vadd.f32 %v866, %v881
    %v887 = vadd.f32 %v867, %v883
    %v888 = vtanh.pop %v886
    %v889 = vtanh.pop %v887
    %892 = vrot.lane.b32.xlu0 %v888, 64
    %v893 = vpop.permute.xlu0 %892
    %894 = vrot.lane.b32.xlu0 %v889, 64
    %v895 = vpop.permute.xlu0 %894
    %v898 = vmul.f32 %v855, %v893
    %v899 = vmul.f32 %v857, %v895
    %v902 = vrot.slane %v899, 7
    %vm903 = vcmask 1045509
    %v904 = vsel %vm903, %v902, %v898
    %905 = vrot.lane.b32.xlu0 %v904, 32
    %v906 = vpop.permute.xlu0 %905
    %vm908 = vcmask 259076
    %909 = vst.msk [vmem:[#allocation2 + $0x4] sm:$0x30] %vm908, %v906
    %v910 = vrot.slane %v898, 4
    %v911 = vrot.slane %v899, 3
    %v912 = vsel %vm318, %v911, %v910
    %913 = vrot.lane.b32.xlu0 %v912, 32
    %v914 = vpop.permute.xlu0 %913
    %v915 = vsel %vm106, %v914, 0
    %917 = vmatprep.subr.mxu0 0.0
    %918 = vmatpush1.msra.mxu0 0.0
    %919 = vmatprep.subr.mxu0 0.0
    %920 = vmatpush1.msra.mxu0 0.0
    %921 = vmatprep.subr.mxu0 0.0
    %922 = vmatpush1.msra.mxu0 0.0
    %923 = vmatprep.subr.mxu0 0.0
    %924 = vmatpush1.msra.mxu0 0.0
    %925 = vmatprep.subr.mxu0 0.0
    %926 = vmatpush1.msra.mxu0 0.0
    %927 = vmatprep.subr.mxu0 0.0
    %928 = vmatpush1.msra.mxu0 0.0
    %929 = vmatprep.subr.mxu0 0.0
    %930 = vmatpush1.msra.mxu0 0.0
    %931 = vmatprep.subr.mxu0 0.0
    %932 = vmatpush1.msra.mxu0 0.0
    %933 = vmatprep.subr.mxu0 0.0
    %934 = vmatpush1.msra.mxu0 0.0
    %935 = vmatprep.subr.mxu0 0.0
    %936 = vmatpush1.msra.mxu0 0.0
    %937 = vmatprep.subr.mxu0 0.0
    %938 = vmatpush1.msra.mxu0 0.0
    %939 = vmatprep.subr.mxu0 0.0
    %940 = vmatpush1.msra.mxu0 0.0
    %941 = vmatprep.subr.mxu0 0.0
    %942 = vmatpush1.msra.mxu0 %v96
    %943 = vmatprep.subr.mxu0 0.0
    %944 = vmatpush1.msra.mxu0 %v95
    %945 = vmatprep.subr.mxu0 0.0
    %946 = vmatpush1.msra.mxu0 %v94
    %947 = vmatprep.subr.mxu0 0.0
    %948 = vmatpush1.msra.mxu0 %v93
    %949 = vmatprep.subr.mxu0 0.0
    %950 = vmatpush2.msra.mxu0 0.0
    %951 = vmatprep.subr.mxu0 0.0
    %952 = vmatpush2.msra.mxu0 0.0
    %953 = vmatprep.subr.mxu0 0.0
    %954 = vmatpush2.msra.mxu0 0.0
    %955 = vmatprep.subr.mxu0 0.0
    %956 = vmatpush2.msra.mxu0 0.0
    %957 = vmatprep.subr.mxu0 0.0
    %958 = vmatpush2.msra.mxu0 0.0
    %959 = vmatprep.subr.mxu0 0.0
    %960 = vmatpush2.msra.mxu0 0.0
    %961 = vmatprep.subr.mxu0 0.0
    %962 = vmatpush2.msra.mxu0 0.0
    %963 = vmatprep.subr.mxu0 0.0
    %964 = vmatpush2.msra.mxu0 0.0
    %965 = vmatprep.subr.mxu0 0.0
    %966 = vmatpush2.msra.mxu0 0.0
    %967 = vmatprep.subr.mxu0 0.0
    %968 = vmatpush2.msra.mxu0 0.0
    %969 = vmatprep.subr.mxu0 0.0
    %970 = vmatpush2.msra.mxu0 0.0
    %971 = vmatprep.subr.mxu0 0.0
    %972 = vmatpush2.msra.mxu0 0.0
    %973 = vmatprep.subr.mxu0 0.0
    %974 = vmatpush2.msra.mxu0 0.0
    %975 = vmatprep.subr.mxu0 0.0
    %976 = vmatpush2.msra.mxu0 0.0
    %977 = vmatprep.subr.mxu0 0.0
    %978 = vmatpush2.msra.mxu0 0.0
    %979 = vmatprep.subr.mxu0 0.0
    %980 = vmatpush2.msra.mxu0 0.0
    %981 = vmatprep.mubr.f32.mxu0 0.0
    %982 = vmatmul.mubr.f32.gmra.mxu0 %v915
    %v983 = vpop.f32.mrf.mxu0
    %v984 = vadd.f32 0.0, %v983
    %v985 = vpop.f32.mrf.mxu0
    %986 = vdwg.mxu0
    %v988 = vrot.slane %v984, 3
    %v989 = vrot.slane %v984, 4
    %v992 = vadd.f32 %v180, %v988
    %v993 = vadd.f32 %v185, %v989
    %v994 = vxor.u32 %v992, 2147483648
    %v995 = vxor.u32 %v993, 2147483648
    %v996 = vmul.f32 %v994, 1.442695
    %v997 = vpow.pop %v996
    %v998 = vmul.f32 %v995, 1.442695
    %v999 = vpow.pop %v998
    %v1000 = vadd.f32 %v997, 1.0
    %v1001 = vadd.f32 %v999, 1.0
    %v1002 = vrcp.pop %v1000
    %v1003 = vmul.f32 1.0, %v1002
    %v1004 = vrcp.pop %v1001
    %v1005 = vmul.f32 1.0, %v1004
    %v1006 = vtanh.pop %v992
    %v1007 = vtanh.pop %v993
    %v1010 = vrot.slane %v886, 7
    %v1011 = vrot.slane %v887, 7
    %v1014 = vmul.f32 %v1003, %v1010
    %v1015 = vmul.f32 %v1005, %v1011
    %1018 = vrot.lane.b32.xlu0 %v1006, 64
    %v1019 = vpop.permute.xlu0 %1018
    %1020 = vrot.lane.b32.xlu0 %v1007, 64
    %v1021 = vpop.permute.xlu0 %1020
    %v1024 = vmul.f32 %v1003, %v1019
    %v1025 = vmul.f32 %v1005, %v1021
    %1028 = vrot.lane.b32.xlu0 %v1024, 32
    %v1029 = vpop.permute.xlu0 %1028
    %1030 = vrot.lane.b32.xlu0 %v1025, 32
    %v1031 = vpop.permute.xlu0 %1030
    %v1034 = vadd.f32 %v1014, %v1029
    %v1035 = vadd.f32 %v1015, %v1031
    %v1036 = vtanh.pop %v1034
    %v1037 = vtanh.pop %v1035
    %1040 = vrot.lane.b32.xlu0 %v1036, 64
    %v1041 = vpop.permute.xlu0 %1040
    %1042 = vrot.lane.b32.xlu0 %v1037, 64
    %v1043 = vpop.permute.xlu0 %1042
    %v1046 = vmul.f32 %v1003, %v1041
    %v1047 = vmul.f32 %v1005, %v1043
    %v1050 = vrot.slane %v1047, 7
    %vm1051 = vcmask 1046534
    %v1052 = vsel %vm1051, %v1050, %v1046
    %1053 = vrot.lane.b32.xlu0 %v1052, 32
    %v1054 = vpop.permute.xlu0 %1053
    %vm1056 = vcmask 260101
    %1057 = vst.msk [vmem:[#allocation2 + $0x5] sm:$0x60] %vm1056, %v1054
    %v1058 = vrot.slane %v1046, 5
    %v1059 = vrot.slane %v1047, 4
    %v1060 = vsel %vm318, %v1059, %v1058
    %1061 = vrot.lane.b32.xlu0 %v1060, 32
    %v1062 = vpop.permute.xlu0 %1061
    %v1063 = vsel %vm106, %v1062, 0
    %1065 = vmatprep.subr.mxu0 0.0
    %1066 = vmatpush1.msra.mxu0 0.0
    %1067 = vmatprep.subr.mxu0 0.0
    %1068 = vmatpush1.msra.mxu0 0.0
    %1069 = vmatprep.subr.mxu0 0.0
    %1070 = vmatpush1.msra.mxu0 0.0
    %1071 = vmatprep.subr.mxu0 0.0
    %1072 = vmatpush1.msra.mxu0 0.0
    %1073 = vmatprep.subr.mxu0 0.0
    %1074 = vmatpush1.msra.mxu0 0.0
    %1075 = vmatprep.subr.mxu0 0.0
    %1076 = vmatpush1.msra.mxu0 0.0
    %1077 = vmatprep.subr.mxu0 0.0
    %1078 = vmatpush1.msra.mxu0 0.0
    %1079 = vmatprep.subr.mxu0 0.0
    %1080 = vmatpush1.msra.mxu0 0.0
    %1081 = vmatprep.subr.mxu0 0.0
    %1082 = vmatpush1.msra.mxu0 0.0
    %1083 = vmatprep.subr.mxu0 0.0
    %1084 = vmatpush1.msra.mxu0 0.0
    %1085 = vmatprep.subr.mxu0 0.0
    %1086 = vmatpush1.msra.mxu0 0.0
    %1087 = vmatprep.subr.mxu0 0.0
    %1088 = vmatpush1.msra.mxu0 0.0
    %1089 = vmatprep.subr.mxu0 0.0
    %1090 = vmatpush1.msra.mxu0 %v96
    %1091 = vmatprep.subr.mxu0 0.0
    %1092 = vmatpush1.msra.mxu0 %v95
    %1093 = vmatprep.subr.mxu0 0.0
    %1094 = vmatpush1.msra.mxu0 %v94
    %1095 = vmatprep.subr.mxu0 0.0
    %1096 = vmatpush1.msra.mxu0 %v93
    %1097 = vmatprep.subr.mxu0 0.0
    %1098 = vmatpush2.msra.mxu0 0.0
    %1099 = vmatprep.subr.mxu0 0.0
    %1100 = vmatpush2.msra.mxu0 0.0
    %1101 = vmatprep.subr.mxu0 0.0
    %1102 = vmatpush2.msra.mxu0 0.0
    %1103 = vmatprep.subr.mxu0 0.0
    %1104 = vmatpush2.msra.mxu0 0.0
    %1105 = vmatprep.subr.mxu0 0.0
    %1106 = vmatpush2.msra.mxu0 0.0
    %1107 = vmatprep.subr.mxu0 0.0
    %1108 = vmatpush2.msra.mxu0 0.0
    %1109 = vmatprep.subr.mxu0 0.0
    %1110 = vmatpush2.msra.mxu0 0.0
    %1111 = vmatprep.subr.mxu0 0.0
    %1112 = vmatpush2.msra.mxu0 0.0
    %1113 = vmatprep.subr.mxu0 0.0
    %1114 = vmatpush2.msra.mxu0 0.0
    %1115 = vmatprep.subr.mxu0 0.0
    %1116 = vmatpush2.msra.mxu0 0.0
    %1117 = vmatprep.subr.mxu0 0.0
    %1118 = vmatpush2.msra.mxu0 0.0
    %1119 = vmatprep.subr.mxu0 0.0
    %1120 = vmatpush2.msra.mxu0 0.0
    %1121 = vmatprep.subr.mxu0 0.0
    %1122 = vmatpush2.msra.mxu0 0.0
    %1123 = vmatprep.subr.mxu0 0.0
    %1124 = vmatpush2.msra.mxu0 0.0
    %1125 = vmatprep.subr.mxu0 0.0
    %1126 = vmatpush2.msra.mxu0 0.0
    %1127 = vmatprep.subr.mxu0 0.0
    %1128 = vmatpush2.msra.mxu0 0.0
    %1129 = vmatprep.mubr.f32.mxu0 0.0
    %1130 = vmatmul.mubr.f32.gmra.mxu0 %v1063
    %v1131 = vpop.f32.mrf.mxu0
    %v1132 = vadd.f32 0.0, %v1131
    %v1133 = vpop.f32.mrf.mxu0
    %1134 = vdwg.mxu0
    %v1136 = vrot.slane %v1132, 2
    %v1137 = vrot.slane %v1132, 3
    %v1140 = vadd.f32 %v180, %v1136
    %v1141 = vadd.f32 %v185, %v1137
    %v1142 = vxor.u32 %v1140, 2147483648
    %v1143 = vxor.u32 %v1141, 2147483648
    %v1144 = vmul.f32 %v1142, 1.442695
    %v1145 = vpow.pop %v1144
    %v1146 = vmul.f32 %v1143, 1.442695
    %v1147 = vpow.pop %v1146
    %v1148 = vadd.f32 %v1145, 1.0
    %v1149 = vadd.f32 %v1147, 1.0
    %v1150 = vrcp.pop %v1148
    %v1151 = vmul.f32 1.0, %v1150
    %v1152 = vrcp.pop %v1149
    %v1153 = vmul.f32 1.0, %v1152
    %v1154 = vtanh.pop %v1140
    %v1155 = vtanh.pop %v1141
    %v1158 = vrot.slane %v1034, 7
    %v1159 = vrot.slane %v1035, 7
    %v1162 = vmul.f32 %v1151, %v1158
    %v1163 = vmul.f32 %v1153, %v1159
    %1166 = vrot.lane.b32.xlu0 %v1154, 64
    %v1167 = vpop.permute.xlu0 %1166
    %1168 = vrot.lane.b32.xlu0 %v1155, 64
    %v1169 = vpop.permute.xlu0 %1168
    %v1172 = vmul.f32 %v1151, %v1167
    %v1173 = vmul.f32 %v1153, %v1169
    %1176 = vrot.lane.b32.xlu0 %v1172, 32
    %v1177 = vpop.permute.xlu0 %1176
    %1178 = vrot.lane.b32.xlu0 %v1173, 32
    %v1179 = vpop.permute.xlu0 %1178
    %v1182 = vadd.f32 %v1162, %v1177
    %v1183 = vadd.f32 %v1163, %v1179
    %v1184 = vtanh.pop %v1182
    %v1185 = vtanh.pop %v1183
    %1188 = vrot.lane.b32.xlu0 %v1184, 64
    %v1189 = vpop.permute.xlu0 %1188
    %1190 = vrot.lane.b32.xlu0 %v1185, 64
    %v1191 = vpop.permute.xlu0 %1190
    %v1194 = vmul.f32 %v1151, %v1189
    %v1195 = vmul.f32 %v1153, %v1191
    %v1198 = vrot.slane %v1195, 7
    %vm1199 = vcmask 1047559
    %v1200 = vsel %vm1199, %v1198, %v1194
    %1201 = vrot.lane.b32.xlu0 %v1200, 32
    %v1202 = vpop.permute.xlu0 %1201
    %vm1204 = vcmask 261126
    %1205 = vst.msk [vmem:[#allocation2 + $0x6] sm:$0xc0] %vm1204, %v1202
    %v1206 = vrot.slane %v1194, 6
    %v1207 = vrot.slane %v1195, 5
    %v1208 = vsel %vm318, %v1207, %v1206
    %1209 = vrot.lane.b32.xlu0 %v1208, 32
    %v1210 = vpop.permute.xlu0 %1209
    %v1211 = vsel %vm106, %v1210, 0
    %1213 = vmatprep.subr.mxu0 0.0
    %1214 = vmatpush1.msra.mxu0 0.0
    %1215 = vmatprep.subr.mxu0 0.0
    %1216 = vmatpush1.msra.mxu0 0.0
    %1217 = vmatprep.subr.mxu0 0.0
    %1218 = vmatpush1.msra.mxu0 0.0
    %1219 = vmatprep.subr.mxu0 0.0
    %1220 = vmatpush1.msra.mxu0 0.0
    %1221 = vmatprep.subr.mxu0 0.0
    %1222 = vmatpush1.msra.mxu0 0.0
    %1223 = vmatprep.subr.mxu0 0.0
    %1224 = vmatpush1.msra.mxu0 0.0
    %1225 = vmatprep.subr.mxu0 0.0
    %1226 = vmatpush1.msra.mxu0 0.0
    %1227 = vmatprep.subr.mxu0 0.0
    %1228 = vmatpush1.msra.mxu0 0.0
    %1229 = vmatprep.subr.mxu0 0.0
    %1230 = vmatpush1.msra.mxu0 0.0
    %1231 = vmatprep.subr.mxu0 0.0
    %1232 = vmatpush1.msra.mxu0 0.0
    %1233 = vmatprep.subr.mxu0 0.0
    %1234 = vmatpush1.msra.mxu0 0.0
    %1235 = vmatprep.subr.mxu0 0.0
    %1236 = vmatpush1.msra.mxu0 0.0
    %1237 = vmatprep.subr.mxu0 0.0
    %1238 = vmatpush1.msra.mxu0 %v96
    %1239 = vmatprep.subr.mxu0 0.0
    %1240 = vmatpush1.msra.mxu0 %v95
    %1241 = vmatprep.subr.mxu0 0.0
    %1242 = vmatpush1.msra.mxu0 %v94
    %1243 = vmatprep.subr.mxu0 0.0
    %1244 = vmatpush1.msra.mxu0 %v93
    %1245 = vmatprep.subr.mxu0 0.0
    %1246 = vmatpush2.msra.mxu0 0.0
    %1247 = vmatprep.subr.mxu0 0.0
    %1248 = vmatpush2.msra.mxu0 0.0
    %1249 = vmatprep.subr.mxu0 0.0
    %1250 = vmatpush2.msra.mxu0 0.0
    %1251 = vmatprep.subr.mxu0 0.0
    %1252 = vmatpush2.msra.mxu0 0.0
    %1253 = vmatprep.subr.mxu0 0.0
    %1254 = vmatpush2.msra.mxu0 0.0
    %1255 = vmatprep.subr.mxu0 0.0
    %1256 = vmatpush2.msra.mxu0 0.0
    %1257 = vmatprep.subr.mxu0 0.0
    %1258 = vmatpush2.msra.mxu0 0.0
    %1259 = vmatprep.subr.mxu0 0.0
    %1260 = vmatpush2.msra.mxu0 0.0
    %1261 = vmatprep.subr.mxu0 0.0
    %1262 = vmatpush2.msra.mxu0 0.0
    %1263 = vmatprep.subr.mxu0 0.0
    %1264 = vmatpush2.msra.mxu0 0.0
    %1265 = vmatprep.subr.mxu0 0.0
    %1266 = vmatpush2.msra.mxu0 0.0
    %1267 = vmatprep.subr.mxu0 0.0
    %1268 = vmatpush2.msra.mxu0 0.0
    %1269 = vmatprep.subr.mxu0 0.0
    %1270 = vmatpush2.msra.mxu0 0.0
    %1271 = vmatprep.subr.mxu0 0.0
    %1272 = vmatpush2.msra.mxu0 0.0
    %1273 = vmatprep.subr.mxu0 0.0
    %1274 = vmatpush2.msra.mxu0 0.0
    %1275 = vmatprep.subr.mxu0 0.0
    %1276 = vmatpush2.msra.mxu0 0.0
    %1277 = vmatprep.mubr.f32.mxu0 0.0
    %1278 = vmatmul.mubr.f32.gmra.mxu0 %v1211
    %v1279 = vpop.f32.mrf.mxu0
    %v1280 = vadd.f32 0.0, %v1279
    %v1281 = vpop.f32.mrf.mxu0
    %1282 = vdwg.mxu0
    %v1284 = vrot.slane %v1280, 1
    %v1285 = vrot.slane %v1280, 2
    %v1288 = vadd.f32 %v180, %v1284
    %v1289 = vadd.f32 %v185, %v1285
    %v1290 = vxor.u32 %v1288, 2147483648
    %v1291 = vxor.u32 %v1289, 2147483648
    %v1292 = vmul.f32 %v1290, 1.442695
    %v1293 = vpow.pop %v1292
    %v1294 = vmul.f32 %v1291, 1.442695
    %v1295 = vpow.pop %v1294
    %v1296 = vadd.f32 %v1293, 1.0
    %v1297 = vadd.f32 %v1295, 1.0
    %v1298 = vrcp.pop %v1296
    %v1299 = vmul.f32 1.0, %v1298
    %v1300 = vrcp.pop %v1297
    %v1301 = vmul.f32 1.0, %v1300
    %v1302 = vtanh.pop %v1288
    %v1303 = vtanh.pop %v1289
    %v1306 = vrot.slane %v1182, 7
    %v1307 = vrot.slane %v1183, 7
    %v1310 = vmul.f32 %v1299, %v1306
    %v1311 = vmul.f32 %v1301, %v1307
    %1314 = vrot.lane.b32.xlu0 %v1302, 64
    %v1315 = vpop.permute.xlu0 %1314
    %1316 = vrot.lane.b32.xlu0 %v1303, 64
    %v1317 = vpop.permute.xlu0 %1316
    %v1320 = vmul.f32 %v1299, %v1315
    %v1321 = vmul.f32 %v1301, %v1317
    %1324 = vrot.lane.b32.xlu0 %v1320, 32
    %v1325 = vpop.permute.xlu0 %1324
    %1326 = vrot.lane.b32.xlu0 %v1321, 32
    %v1327 = vpop.permute.xlu0 %1326
    %v1330 = vadd.f32 %v1310, %v1325
    %v1331 = vadd.f32 %v1311, %v1327
    %v1332 = vtanh.pop %v1330
    %v1333 = vtanh.pop %v1331
    %1336 = vrot.lane.b32.xlu0 %v1332, 64
    %v1337 = vpop.permute.xlu0 %1336
    %1338 = vrot.lane.b32.xlu0 %v1333, 64
    %v1339 = vpop.permute.xlu0 %1338
    %v1342 = vmul.f32 %v1299, %v1337
    %v1343 = vmul.f32 %v1301, %v1339
    %v1346 = vrot.slane %v1343, 7
    %1347 = vrot.lane.b32.xlu0 %v1342, 32
    %v1348 = vpop.permute.xlu0 %1347
    %1349 = vrot.lane.b32.xlu0 %v1346, 32
    %v1350 = vpop.permute.xlu0 %1349
    %vm1353 = vcmask 261127
    %1354 = vst.msk [vmem:[#allocation2 + $0x7] sm:$0x80] %vm1353, %v1348
    %vm1355 = vcmask 253952
    %1356 = vst.msk [vmem:[#allocation2 + $0xf] sm:$0x1] %vm1355, %v1350
    %v1357 = vld [vmem:[#allocation8] sm:$0xff]
    %v1358 = vld [vmem:[#allocation8 + $0x8] sm:$0xff]
    %v1359 = vld [vmem:[#allocation8 + $0x10] sm:$0xff]
    %v1360 = vld [vmem:[#allocation8 + $0x18] sm:$0xff]
    %v1361 = vld [vmem:[#allocation9] sm:$0xff]
    %v1362 = vld [vmem:[#allocation9 + $0x8] sm:$0xff]
    %v1363 = vld [vmem:[#allocation9 + $0x10] sm:$0xff]
    %v1364 = vld [vmem:[#allocation9 + $0x18] sm:$0xff]
    %v1365 = vld [vmem:[%s6] sm:$0x1]
    %v1366 = vld [vmem:[#allocation2] sm:$0xff]
    %v1367 = vld [vmem:[#allocation2 + $0x8] sm:$0xff]
    %v1369 = vlaneseq
    %v1370 = vshrl.u32 %v1369, 7
    %v1371 = vsub.s32 0, %v1370
    %v1372 = vrot.slane %v1365, %v1371
    %v1375 = vsel %vm106, %v1366, 0
    %v1378 = vsel %vm106, %v1367, 0
    %1380 = vmatprep.subr.mxu0 0.0
    %1381 = vmatpush1.msra.mxu0 0.0
    %1382 = vmatprep.subr.mxu0 0.0
    %1383 = vmatpush1.msra.mxu0 0.0
    %1384 = vmatprep.subr.mxu0 0.0
    %1385 = vmatpush1.msra.mxu0 0.0
    %1386 = vmatprep.subr.mxu0 0.0
    %1387 = vmatpush1.msra.mxu0 0.0
    %1388 = vmatprep.subr.mxu0 0.0
    %1389 = vmatpush1.msra.mxu0 0.0
    %1390 = vmatprep.subr.mxu0 0.0
    %1391 = vmatpush1.msra.mxu0 0.0
    %1392 = vmatprep.subr.mxu0 0.0
    %1393 = vmatpush1.msra.mxu0 0.0
    %1394 = vmatprep.subr.mxu0 0.0
    %1395 = vmatpush1.msra.mxu0 0.0
    %1396 = vmatprep.subr.mxu0 0.0
    %1397 = vmatpush1.msra.mxu0 0.0
    %1398 = vmatprep.subr.mxu0 0.0
    %1399 = vmatpush1.msra.mxu0 0.0
    %1400 = vmatprep.subr.mxu0 0.0
    %1401 = vmatpush1.msra.mxu0 0.0
    %1402 = vmatprep.subr.mxu0 0.0
    %1403 = vmatpush1.msra.mxu0 0.0
    %1404 = vmatprep.subr.mxu0 0.0
    %1405 = vmatpush1.msra.mxu0 %v1360
    %1406 = vmatprep.subr.mxu0 0.0
    %1407 = vmatpush1.msra.mxu0 %v1359
    %1408 = vmatprep.subr.mxu0 0.0
    %1409 = vmatpush1.msra.mxu0 %v1358
    %1410 = vmatprep.subr.mxu0 0.0
    %1411 = vmatpush1.msra.mxu0 %v1357
    %1412 = vmatprep.subr.mxu0 0.0
    %1413 = vmatpush2.msra.mxu0 0.0
    %1414 = vmatprep.subr.mxu0 0.0
    %1415 = vmatpush2.msra.mxu0 0.0
    %1416 = vmatprep.subr.mxu0 0.0
    %1417 = vmatpush2.msra.mxu0 0.0
    %1418 = vmatprep.subr.mxu0 0.0
    %1419 = vmatpush2.msra.mxu0 0.0
    %1420 = vmatprep.subr.mxu0 0.0
    %1421 = vmatpush2.msra.mxu0 0.0
    %1422 = vmatprep.subr.mxu0 0.0
    %1423 = vmatpush2.msra.mxu0 0.0
    %1424 = vmatprep.subr.mxu0 0.0
    %1425 = vmatpush2.msra.mxu0 0.0
    %1426 = vmatprep.subr.mxu0 0.0
    %1427 = vmatpush2.msra.mxu0 0.0
    %1428 = vmatprep.subr.mxu0 0.0
    %1429 = vmatpush2.msra.mxu0 0.0
    %1430 = vmatprep.subr.mxu0 0.0
    %1431 = vmatpush2.msra.mxu0 0.0
    %1432 = vmatprep.subr.mxu0 0.0
    %1433 = vmatpush2.msra.mxu0 0.0
    %1434 = vmatprep.subr.mxu0 0.0
    %1435 = vmatpush2.msra.mxu0 0.0
    %1436 = vmatprep.subr.mxu0 0.0
    %1437 = vmatpush2.msra.mxu0 0.0
    %1438 = vmatprep.subr.mxu0 0.0
    %1439 = vmatpush2.msra.mxu0 0.0
    %1440 = vmatprep.subr.mxu0 0.0
    %1441 = vmatpush2.msra.mxu0 0.0
    %1442 = vmatprep.subr.mxu0 0.0
    %1443 = vmatpush2.msra.mxu0 0.0
    %1444 = vmatprep.mubr.f32.mxu0 0.0
    %1445 = vmatmul.mubr.f32.gmra.mxu0 %v1375
    %v1446 = vpop.f32.mrf.mxu0
    %v1447 = vadd.f32 %v1372, %v1446
    %v1448 = vpop.f32.mrf.mxu0
    %1449 = vmatprep.mubr.f32.mxu0 0.0
    %1450 = vmatmul.mubr.f32.gmra.mxu0 %v1378
    %v1451 = vpop.f32.mrf.mxu0
    %v1452 = vadd.f32 %v1372, %v1451
    %v1453 = vpop.f32.mrf.mxu0
    %1454 = vdwg.mxu0
    %1455 = vmatprep.subr.mxu0 0.0
    %1456 = vmatpush1.msra.mxu0 0.0
    %1457 = vmatprep.subr.mxu0 0.0
    %1458 = vmatpush1.msra.mxu0 0.0
    %1459 = vmatprep.subr.mxu0 0.0
    %1460 = vmatpush1.msra.mxu0 0.0
    %1461 = vmatprep.subr.mxu0 0.0
    %1462 = vmatpush1.msra.mxu0 0.0
    %1463 = vmatprep.subr.mxu0 0.0
    %1464 = vmatpush1.msra.mxu0 0.0
    %1465 = vmatprep.subr.mxu0 0.0
    %1466 = vmatpush1.msra.mxu0 0.0
    %1467 = vmatprep.subr.mxu0 0.0
    %1468 = vmatpush1.msra.mxu0 0.0
    %1469 = vmatprep.subr.mxu0 0.0
    %1470 = vmatpush1.msra.mxu0 0.0
    %1471 = vmatprep.subr.mxu0 0.0
    %1472 = vmatpush1.msra.mxu0 0.0
    %1473 = vmatprep.subr.mxu0 0.0
    %1474 = vmatpush1.msra.mxu0 0.0
    %1475 = vmatprep.subr.mxu0 0.0
    %1476 = vmatpush1.msra.mxu0 0.0
    %1477 = vmatprep.subr.mxu0 0.0
    %1478 = vmatpush1.msra.mxu0 0.0
    %1479 = vmatprep.subr.mxu0 0.0
    %1480 = vmatpush1.msra.mxu0 %v1364
    %1481 = vmatprep.subr.mxu0 0.0
    %1482 = vmatpush1.msra.mxu0 %v1363
    %1483 = vmatprep.subr.mxu0 0.0
    %1484 = vmatpush1.msra.mxu0 %v1362
    %1485 = vmatprep.subr.mxu0 0.0
    %1486 = vmatpush1.msra.mxu0 %v1361
    %1487 = vmatprep.subr.mxu0 0.0
    %1488 = vmatpush2.msra.mxu0 0.0
    %1489 = vmatprep.subr.mxu0 0.0
    %1490 = vmatpush2.msra.mxu0 0.0
    %1491 = vmatprep.subr.mxu0 0.0
    %1492 = vmatpush2.msra.mxu0 0.0
    %1493 = vmatprep.subr.mxu0 0.0
    %1494 = vmatpush2.msra.mxu0 0.0
    %1495 = vmatprep.subr.mxu0 0.0
    %1496 = vmatpush2.msra.mxu0 0.0
    %1497 = vmatprep.subr.mxu0 0.0
    %1498 = vmatpush2.msra.mxu0 0.0
    %1499 = vmatprep.subr.mxu0 0.0
    %1500 = vmatpush2.msra.mxu0 0.0
    %1501 = vmatprep.subr.mxu0 0.0
    %1502 = vmatpush2.msra.mxu0 0.0
    %1503 = vmatprep.subr.mxu0 0.0
    %1504 = vmatpush2.msra.mxu0 0.0
    %1505 = vmatprep.subr.mxu0 0.0
    %1506 = vmatpush2.msra.mxu0 0.0
    %1507 = vmatprep.subr.mxu0 0.0
    %1508 = vmatpush2.msra.mxu0 0.0
    %1509 = vmatprep.subr.mxu0 0.0
    %1510 = vmatpush2.msra.mxu0 0.0
    %1511 = vmatprep.subr.mxu0 0.0
    %1512 = vmatpush2.msra.mxu0 0.0
    %1513 = vmatprep.subr.mxu0 0.0
    %1514 = vmatpush2.msra.mxu0 0.0
    %1515 = vmatprep.subr.mxu0 0.0
    %1516 = vmatpush2.msra.mxu0 0.0
    %1517 = vmatprep.subr.mxu0 0.0
    %1518 = vmatpush2.msra.mxu0 0.0
    %1519 = vmatprep.mubr.f32.mxu0 0.0
    %1520 = vmatmul.mubr.f32.gmra.mxu0 %v189
    %v1521 = vpop.f32.mrf.mxu0
    %v1522 = vadd.f32 0.0, %v1521
    %v1523 = vpop.f32.mrf.mxu0
    %1524 = vdwg.mxu0
    %v1525 = vadd.f32 %v1447, %v1522
    %v1526 = vxor.u32 %v1525, 2147483648
    %v1527 = vmul.f32 %v1526, 1.442695
    %v1528 = vpow.pop %v1527
    %v1529 = vadd.f32 %v1528, 1.0
    %v1530 = vrcp.pop %v1529
    %v1531 = vmul.f32 1.0, %v1530
    %v1532 = vtanh.pop %v1525
    %v1533 = vmul.f32 %v1531, 0.0
    %1535 = vrot.lane.b32.xlu0 %v1532, 64
    %v1536 = vpop.permute.xlu0 %1535
    %v1538 = vmul.f32 %v1531, %v1536
    %1540 = vrot.lane.b32.xlu0 %v1538, 32
    %v1541 = vpop.permute.xlu0 %1540
    %v1543 = vadd.f32 %v1533, %v1541
    %v1544 = vtanh.pop %v1543
    %1546 = vrot.lane.b32.xlu0 %v1544, 64
    %v1547 = vpop.permute.xlu0 %1546
    %v1549 = vmul.f32 %v1531, %v1547
    %1551 = vrot.lane.b32.xlu0 %v1549, 32
    %v1552 = vpop.permute.xlu0 %1551
    %1554 = vst.msk [vmem:[#allocation2] sm:$0x3] %vm323, %v1552
    %v1555 = vsel %vm106, %v1552, 0
    %1557 = vmatprep.subr.mxu0 0.0
    %1558 = vmatpush1.msra.mxu0 0.0
    %1559 = vmatprep.subr.mxu0 0.0
    %1560 = vmatpush1.msra.mxu0 0.0
    %1561 = vmatprep.subr.mxu0 0.0
    %1562 = vmatpush1.msra.mxu0 0.0
    %1563 = vmatprep.subr.mxu0 0.0
    %1564 = vmatpush1.msra.mxu0 0.0
    %1565 = vmatprep.subr.mxu0 0.0
    %1566 = vmatpush1.msra.mxu0 0.0
    %1567 = vmatprep.subr.mxu0 0.0
    %1568 = vmatpush1.msra.mxu0 0.0
    %1569 = vmatprep.subr.mxu0 0.0
    %1570 = vmatpush1.msra.mxu0 0.0
    %1571 = vmatprep.subr.mxu0 0.0
    %1572 = vmatpush1.msra.mxu0 0.0
    %1573 = vmatprep.subr.mxu0 0.0
    %1574 = vmatpush1.msra.mxu0 0.0
    %1575 = vmatprep.subr.mxu0 0.0
    %1576 = vmatpush1.msra.mxu0 0.0
    %1577 = vmatprep.subr.mxu0 0.0
    %1578 = vmatpush1.msra.mxu0 0.0
    %1579 = vmatprep.subr.mxu0 0.0
    %1580 = vmatpush1.msra.mxu0 0.0
    %1581 = vmatprep.subr.mxu0 0.0
    %1582 = vmatpush1.msra.mxu0 %v1364
    %1583 = vmatprep.subr.mxu0 0.0
    %1584 = vmatpush1.msra.mxu0 %v1363
    %1585 = vmatprep.subr.mxu0 0.0
    %1586 = vmatpush1.msra.mxu0 %v1362
    %1587 = vmatprep.subr.mxu0 0.0
    %1588 = vmatpush1.msra.mxu0 %v1361
    %1589 = vmatprep.subr.mxu0 0.0
    %1590 = vmatpush2.msra.mxu0 0.0
    %1591 = vmatprep.subr.mxu0 0.0
    %1592 = vmatpush2.msra.mxu0 0.0
    %1593 = vmatprep.subr.mxu0 0.0
    %1594 = vmatpush2.msra.mxu0 0.0
    %1595 = vmatprep.subr.mxu0 0.0
    %1596 = vmatpush2.msra.mxu0 0.0
    %1597 = vmatprep.subr.mxu0 0.0
    %1598 = vmatpush2.msra.mxu0 0.0
    %1599 = vmatprep.subr.mxu0 0.0
    %1600 = vmatpush2.msra.mxu0 0.0
    %1601 = vmatprep.subr.mxu0 0.0
    %1602 = vmatpush2.msra.mxu0 0.0
    %1603 = vmatprep.subr.mxu0 0.0
    %1604 = vmatpush2.msra.mxu0 0.0
    %1605 = vmatprep.subr.mxu0 0.0
    %1606 = vmatpush2.msra.mxu0 0.0
    %1607 = vmatprep.subr.mxu0 0.0
    %1608 = vmatpush2.msra.mxu0 0.0
    %1609 = vmatprep.subr.mxu0 0.0
    %1610 = vmatpush2.msra.mxu0 0.0
    %1611 = vmatprep.subr.mxu0 0.0
    %1612 = vmatpush2.msra.mxu0 0.0
    %1613 = vmatprep.subr.mxu0 0.0
    %1614 = vmatpush2.msra.mxu0 0.0
    %1615 = vmatprep.subr.mxu0 0.0
    %1616 = vmatpush2.msra.mxu0 0.0
    %1617 = vmatprep.subr.mxu0 0.0
    %1618 = vmatpush2.msra.mxu0 0.0
    %1619 = vmatprep.subr.mxu0 0.0
    %1620 = vmatpush2.msra.mxu0 0.0
    %1621 = vmatprep.mubr.f32.mxu0 0.0
    %1622 = vmatmul.mubr.f32.gmra.mxu0 %v1555
    %v1623 = vpop.f32.mrf.mxu0
    %v1624 = vadd.f32 0.0, %v1623
    %v1625 = vpop.f32.mrf.mxu0
    %1626 = vdwg.mxu0
    %v1628 = vrot.slane %v1624, 6
    %v1630 = vadd.f32 %v1447, %v1628
    %v1631 = vxor.u32 %v1630, 2147483648
    %v1632 = vmul.f32 %v1631, 1.442695
    %v1633 = vpow.pop %v1632
    %v1634 = vadd.f32 %v1633, 1.0
    %v1635 = vrcp.pop %v1634
    %v1636 = vmul.f32 1.0, %v1635
    %v1637 = vtanh.pop %v1630
    %v1639 = vrot.slane %v1543, 6
    %v1641 = vmul.f32 %v1636, %v1639
    %1643 = vrot.lane.b32.xlu0 %v1637, 64
    %v1644 = vpop.permute.xlu0 %1643
    %v1646 = vmul.f32 %v1636, %v1644
    %1648 = vrot.lane.b32.xlu0 %v1646, 32
    %v1649 = vpop.permute.xlu0 %1648
    %v1651 = vadd.f32 %v1641, %v1649
    %v1652 = vtanh.pop %v1651
    %1654 = vrot.lane.b32.xlu0 %v1652, 64
    %v1655 = vpop.permute.xlu0 %1654
    %v1657 = vmul.f32 %v1636, %v1655
    %1659 = vrot.lane.b32.xlu0 %v1657, 32
    %v1660 = vpop.permute.xlu0 %1659
    %1662 = vst.msk [vmem:[#allocation2] sm:$0xc] %vm612, %v1660
    %v1663 = vrot.slane %v1657, 2
    %1664 = vrot.lane.b32.xlu0 %v1663, 32
    %v1665 = vpop.permute.xlu0 %1664
    %v1666 = vsel %vm106, %v1665, 0
    %1668 = vmatprep.subr.mxu0 0.0
    %1669 = vmatpush1.msra.mxu0 0.0
    %1670 = vmatprep.subr.mxu0 0.0
    %1671 = vmatpush1.msra.mxu0 0.0
    %1672 = vmatprep.subr.mxu0 0.0
    %1673 = vmatpush1.msra.mxu0 0.0
    %1674 = vmatprep.subr.mxu0 0.0
    %1675 = vmatpush1.msra.mxu0 0.0
    %1676 = vmatprep.subr.mxu0 0.0
    %1677 = vmatpush1.msra.mxu0 0.0
    %1678 = vmatprep.subr.mxu0 0.0
    %1679 = vmatpush1.msra.mxu0 0.0
    %1680 = vmatprep.subr.mxu0 0.0
    %1681 = vmatpush1.msra.mxu0 0.0
    %1682 = vmatprep.subr.mxu0 0.0
    %1683 = vmatpush1.msra.mxu0 0.0
    %1684 = vmatprep.subr.mxu0 0.0
    %1685 = vmatpush1.msra.mxu0 0.0
    %1686 = vmatprep.subr.mxu0 0.0
    %1687 = vmatpush1.msra.mxu0 0.0
    %1688 = vmatprep.subr.mxu0 0.0
    %1689 = vmatpush1.msra.mxu0 0.0
    %1690 = vmatprep.subr.mxu0 0.0
    %1691 = vmatpush1.msra.mxu0 0.0
    %1692 = vmatprep.subr.mxu0 0.0
    %1693 = vmatpush1.msra.mxu0 %v1364
    %1694 = vmatprep.subr.mxu0 0.0
    %1695 = vmatpush1.msra.mxu0 %v1363
    %1696 = vmatprep.subr.mxu0 0.0
    %1697 = vmatpush1.msra.mxu0 %v1362
    %1698 = vmatprep.subr.mxu0 0.0
    %1699 = vmatpush1.msra.mxu0 %v1361
    %1700 = vmatprep.subr.mxu0 0.0
    %1701 = vmatpush2.msra.mxu0 0.0
    %1702 = vmatprep.subr.mxu0 0.0
    %1703 = vmatpush2.msra.mxu0 0.0
    %1704 = vmatprep.subr.mxu0 0.0
    %1705 = vmatpush2.msra.mxu0 0.0
    %1706 = vmatprep.subr.mxu0 0.0
    %1707 = vmatpush2.msra.mxu0 0.0
    %1708 = vmatprep.subr.mxu0 0.0
    %1709 = vmatpush2.msra.mxu0 0.0
    %1710 = vmatprep.subr.mxu0 0.0
    %1711 = vmatpush2.msra.mxu0 0.0
    %1712 = vmatprep.subr.mxu0 0.0
    %1713 = vmatpush2.msra.mxu0 0.0
    %1714 = vmatprep.subr.mxu0 0.0
    %1715 = vmatpush2.msra.mxu0 0.0
    %1716 = vmatprep.subr.mxu0 0.0
    %1717 = vmatpush2.msra.mxu0 0.0
    %1718 = vmatprep.subr.mxu0 0.0
    %1719 = vmatpush2.msra.mxu0 0.0
    %1720 = vmatprep.subr.mxu0 0.0
    %1721 = vmatpush2.msra.mxu0 0.0
    %1722 = vmatprep.subr.mxu0 0.0
    %1723 = vmatpush2.msra.mxu0 0.0
    %1724 = vmatprep.subr.mxu0 0.0
    %1725 = vmatpush2.msra.mxu0 0.0
    %1726 = vmatprep.subr.mxu0 0.0
    %1727 = vmatpush2.msra.mxu0 0.0
    %1728 = vmatprep.subr.mxu0 0.0
    %1729 = vmatpush2.msra.mxu0 0.0
    %1730 = vmatprep.subr.mxu0 0.0
    %1731 = vmatpush2.msra.mxu0 0.0
    %1732 = vmatprep.mubr.f32.mxu0 0.0
    %1733 = vmatmul.mubr.f32.gmra.mxu0 %v1666
    %v1734 = vpop.f32.mrf.mxu0
    %v1735 = vadd.f32 0.0, %v1734
    %v1736 = vpop.f32.mrf.mxu0
    %1737 = vdwg.mxu0
    %v1739 = vrot.slane %v1735, 4
    %v1741 = vadd.f32 %v1447, %v1739
    %v1742 = vxor.u32 %v1741, 2147483648
    %v1743 = vmul.f32 %v1742, 1.442695
    %v1744 = vpow.pop %v1743
    %v1745 = vadd.f32 %v1744, 1.0
    %v1746 = vrcp.pop %v1745
    %v1747 = vmul.f32 1.0, %v1746
    %v1748 = vtanh.pop %v1741
    %v1750 = vrot.slane %v1651, 6
    %v1752 = vmul.f32 %v1747, %v1750
    %1754 = vrot.lane.b32.xlu0 %v1748, 64
    %v1755 = vpop.permute.xlu0 %1754
    %v1757 = vmul.f32 %v1747, %v1755
    %1759 = vrot.lane.b32.xlu0 %v1757, 32
    %v1760 = vpop.permute.xlu0 %1759
    %v1762 = vadd.f32 %v1752, %v1760
    %v1763 = vtanh.pop %v1762
    %1765 = vrot.lane.b32.xlu0 %v1763, 64
    %v1766 = vpop.permute.xlu0 %1765
    %v1768 = vmul.f32 %v1747, %v1766
    %1770 = vrot.lane.b32.xlu0 %v1768, 32
    %v1771 = vpop.permute.xlu0 %1770
    %1773 = vst.msk [vmem:[#allocation2] sm:$0x30] %vm908, %v1771
    %v1774 = vrot.slane %v1768, 4
    %1775 = vrot.lane.b32.xlu0 %v1774, 32
    %v1776 = vpop.permute.xlu0 %1775
    %v1777 = vsel %vm106, %v1776, 0
    %1779 = vmatprep.subr.mxu0 0.0
    %1780 = vmatpush1.msra.mxu0 0.0
    %1781 = vmatprep.subr.mxu0 0.0
    %1782 = vmatpush1.msra.mxu0 0.0
    %1783 = vmatprep.subr.mxu0 0.0
    %1784 = vmatpush1.msra.mxu0 0.0
    %1785 = vmatprep.subr.mxu0 0.0
    %1786 = vmatpush1.msra.mxu0 0.0
    %1787 = vmatprep.subr.mxu0 0.0
    %1788 = vmatpush1.msra.mxu0 0.0
    %1789 = vmatprep.subr.mxu0 0.0
    %1790 = vmatpush1.msra.mxu0 0.0
    %1791 = vmatprep.subr.mxu0 0.0
    %1792 = vmatpush1.msra.mxu0 0.0
    %1793 = vmatprep.subr.mxu0 0.0
    %1794 = vmatpush1.msra.mxu0 0.0
    %1795 = vmatprep.subr.mxu0 0.0
    %1796 = vmatpush1.msra.mxu0 0.0
    %1797 = vmatprep.subr.mxu0 0.0
    %1798 = vmatpush1.msra.mxu0 0.0
    %1799 = vmatprep.subr.mxu0 0.0
    %1800 = vmatpush1.msra.mxu0 0.0
    %1801 = vmatprep.subr.mxu0 0.0
    %1802 = vmatpush1.msra.mxu0 0.0
    %1803 = vmatprep.subr.mxu0 0.0
    %1804 = vmatpush1.msra.mxu0 %v1364
    %1805 = vmatprep.subr.mxu0 0.0
    %1806 = vmatpush1.msra.mxu0 %v1363
    %1807 = vmatprep.subr.mxu0 0.0
    %1808 = vmatpush1.msra.mxu0 %v1362
    %1809 = vmatprep.subr.mxu0 0.0
    %1810 = vmatpush1.msra.mxu0 %v1361
    %1811 = vmatprep.subr.mxu0 0.0
    %1812 = vmatpush2.msra.mxu0 0.0
    %1813 = vmatprep.subr.mxu0 0.0
    %1814 = vmatpush2.msra.mxu0 0.0
    %1815 = vmatprep.subr.mxu0 0.0
    %1816 = vmatpush2.msra.mxu0 0.0
    %1817 = vmatprep.subr.mxu0 0.0
    %1818 = vmatpush2.msra.mxu0 0.0
    %1819 = vmatprep.subr.mxu0 0.0
    %1820 = vmatpush2.msra.mxu0 0.0
    %1821 = vmatprep.subr.mxu0 0.0
    %1822 = vmatpush2.msra.mxu0 0.0
    %1823 = vmatprep.subr.mxu0 0.0
    %1824 = vmatpush2.msra.mxu0 0.0
    %1825 = vmatprep.subr.mxu0 0.0
    %1826 = vmatpush2.msra.mxu0 0.0
    %1827 = vmatprep.subr.mxu0 0.0
    %1828 = vmatpush2.msra.mxu0 0.0
    %1829 = vmatprep.subr.mxu0 0.0
    %1830 = vmatpush2.msra.mxu0 0.0
    %1831 = vmatprep.subr.mxu0 0.0
    %1832 = vmatpush2.msra.mxu0 0.0
    %1833 = vmatprep.subr.mxu0 0.0
    %1834 = vmatpush2.msra.mxu0 0.0
    %1835 = vmatprep.subr.mxu0 0.0
    %1836 = vmatpush2.msra.mxu0 0.0
    %1837 = vmatprep.subr.mxu0 0.0
    %1838 = vmatpush2.msra.mxu0 0.0
    %1839 = vmatprep.subr.mxu0 0.0
    %1840 = vmatpush2.msra.mxu0 0.0
    %1841 = vmatprep.subr.mxu0 0.0
    %1842 = vmatpush2.msra.mxu0 0.0
    %1843 = vmatprep.mubr.f32.mxu0 0.0
    %1844 = vmatmul.mubr.f32.gmra.mxu0 %v1777
    %v1845 = vpop.f32.mrf.mxu0
    %v1846 = vadd.f32 0.0, %v1845
    %v1847 = vpop.f32.mrf.mxu0
    %1848 = vdwg.mxu0
    %v1850 = vrot.slane %v1846, 2
    %v1852 = vadd.f32 %v1447, %v1850
    %v1853 = vxor.u32 %v1852, 2147483648
    %v1854 = vmul.f32 %v1853, 1.442695
    %v1855 = vpow.pop %v1854
    %v1856 = vadd.f32 %v1855, 1.0
    %v1857 = vrcp.pop %v1856
    %v1858 = vmul.f32 1.0, %v1857
    %v1859 = vtanh.pop %v1852
    %v1861 = vrot.slane %v1762, 6
    %v1863 = vmul.f32 %v1858, %v1861
    %1865 = vrot.lane.b32.xlu0 %v1859, 64
    %v1866 = vpop.permute.xlu0 %1865
    %v1868 = vmul.f32 %v1858, %v1866
    %1870 = vrot.lane.b32.xlu0 %v1868, 32
    %v1871 = vpop.permute.xlu0 %1870
    %v1873 = vadd.f32 %v1863, %v1871
    %v1874 = vtanh.pop %v1873
    %1876 = vrot.lane.b32.xlu0 %v1874, 64
    %v1877 = vpop.permute.xlu0 %1876
    %v1879 = vmul.f32 %v1858, %v1877
    %1881 = vrot.lane.b32.xlu0 %v1879, 32
    %v1882 = vpop.permute.xlu0 %1881
    %1884 = vst.msk [vmem:[#allocation2] sm:$0xc0] %vm1204, %v1882
    %v1885 = vrot.slane %v1879, 6
    %1886 = vrot.lane.b32.xlu0 %v1885, 32
    %v1887 = vpop.permute.xlu0 %1886
    %v1888 = vsel %vm106, %v1887, 0
    %1890 = vmatprep.subr.mxu0 0.0
    %1891 = vmatpush1.msra.mxu0 0.0
    %1892 = vmatprep.subr.mxu0 0.0
    %1893 = vmatpush1.msra.mxu0 0.0
    %1894 = vmatprep.subr.mxu0 0.0
    %1895 = vmatpush1.msra.mxu0 0.0
    %1896 = vmatprep.subr.mxu0 0.0
    %1897 = vmatpush1.msra.mxu0 0.0
    %1898 = vmatprep.subr.mxu0 0.0
    %1899 = vmatpush1.msra.mxu0 0.0
    %1900 = vmatprep.subr.mxu0 0.0
    %1901 = vmatpush1.msra.mxu0 0.0
    %1902 = vmatprep.subr.mxu0 0.0
    %1903 = vmatpush1.msra.mxu0 0.0
    %1904 = vmatprep.subr.mxu0 0.0
    %1905 = vmatpush1.msra.mxu0 0.0
    %1906 = vmatprep.subr.mxu0 0.0
    %1907 = vmatpush1.msra.mxu0 0.0
    %1908 = vmatprep.subr.mxu0 0.0
    %1909 = vmatpush1.msra.mxu0 0.0
    %1910 = vmatprep.subr.mxu0 0.0
    %1911 = vmatpush1.msra.mxu0 0.0
    %1912 = vmatprep.subr.mxu0 0.0
    %1913 = vmatpush1.msra.mxu0 0.0
    %1914 = vmatprep.subr.mxu0 0.0
    %1915 = vmatpush1.msra.mxu0 %v1364
    %1916 = vmatprep.subr.mxu0 0.0
    %1917 = vmatpush1.msra.mxu0 %v1363
    %1918 = vmatprep.subr.mxu0 0.0
    %1919 = vmatpush1.msra.mxu0 %v1362
    %1920 = vmatprep.subr.mxu0 0.0
    %1921 = vmatpush1.msra.mxu0 %v1361
    %1922 = vmatprep.subr.mxu0 0.0
    %1923 = vmatpush2.msra.mxu0 0.0
    %1924 = vmatprep.subr.mxu0 0.0
    %1925 = vmatpush2.msra.mxu0 0.0
    %1926 = vmatprep.subr.mxu0 0.0
    %1927 = vmatpush2.msra.mxu0 0.0
    %1928 = vmatprep.subr.mxu0 0.0
    %1929 = vmatpush2.msra.mxu0 0.0
    %1930 = vmatprep.subr.mxu0 0.0
    %1931 = vmatpush2.msra.mxu0 0.0
    %1932 = vmatprep.subr.mxu0 0.0
    %1933 = vmatpush2.msra.mxu0 0.0
    %1934 = vmatprep.subr.mxu0 0.0
    %1935 = vmatpush2.msra.mxu0 0.0
    %1936 = vmatprep.subr.mxu0 0.0
    %1937 = vmatpush2.msra.mxu0 0.0
    %1938 = vmatprep.subr.mxu0 0.0
    %1939 = vmatpush2.msra.mxu0 0.0
    %1940 = vmatprep.subr.mxu0 0.0
    %1941 = vmatpush2.msra.mxu0 0.0
    %1942 = vmatprep.subr.mxu0 0.0
    %1943 = vmatpush2.msra.mxu0 0.0
    %1944 = vmatprep.subr.mxu0 0.0
    %1945 = vmatpush2.msra.mxu0 0.0
    %1946 = vmatprep.subr.mxu0 0.0
    %1947 = vmatpush2.msra.mxu0 0.0
    %1948 = vmatprep.subr.mxu0 0.0
    %1949 = vmatpush2.msra.mxu0 0.0
    %1950 = vmatprep.subr.mxu0 0.0
    %1951 = vmatpush2.msra.mxu0 0.0
    %1952 = vmatprep.subr.mxu0 0.0
    %1953 = vmatpush2.msra.mxu0 0.0
    %1954 = vmatprep.mubr.f32.mxu0 0.0
    %1955 = vmatmul.mubr.f32.gmra.mxu0 %v1888
    %v1956 = vpop.f32.mrf.mxu0
    %v1957 = vadd.f32 0.0, %v1956
    %v1958 = vpop.f32.mrf.mxu0
    %1959 = vdwg.mxu0
    %v1960 = vadd.f32 %v1452, %v1957
    %v1961 = vxor.u32 %v1960, 2147483648
    %v1962 = vmul.f32 %v1961, 1.442695
    %v1963 = vpow.pop %v1962
    %v1964 = vadd.f32 %v1963, 1.0
    %v1965 = vrcp.pop %v1964
    %v1966 = vmul.f32 1.0, %v1965
    %v1967 = vtanh.pop %v1960
    %v1969 = vrot.slane %v1873, 6
    %v1971 = vmul.f32 %v1966, %v1969
    %1973 = vrot.lane.b32.xlu0 %v1967, 64
    %v1974 = vpop.permute.xlu0 %1973
    %v1976 = vmul.f32 %v1966, %v1974
    %1978 = vrot.lane.b32.xlu0 %v1976, 32
    %v1979 = vpop.permute.xlu0 %1978
    %v1981 = vadd.f32 %v1971, %v1979
    %v1982 = vtanh.pop %v1981
    %1984 = vrot.lane.b32.xlu0 %v1982, 64
    %v1985 = vpop.permute.xlu0 %1984
    %v1987 = vmul.f32 %v1966, %v1985
    %1989 = vrot.lane.b32.xlu0 %v1987, 32
    %v1990 = vpop.permute.xlu0 %1989
    %1992 = vst.msk [vmem:[#allocation2 + $0x8] sm:$0x3] %vm323, %v1990
    %v1993 = vsel %vm106, %v1990, 0
    %1995 = vmatprep.subr.mxu0 0.0
    %1996 = vmatpush1.msra.mxu0 0.0
    %1997 = vmatprep.subr.mxu0 0.0
    %1998 = vmatpush1.msra.mxu0 0.0
    %1999 = vmatprep.subr.mxu0 0.0
    %2000 = vmatpush1.msra.mxu0 0.0
    %2001 = vmatprep.subr.mxu0 0.0
    %2002 = vmatpush1.msra.mxu0 0.0
    %2003 = vmatprep.subr.mxu0 0.0
    %2004 = vmatpush1.msra.mxu0 0.0
    %2005 = vmatprep.subr.mxu0 0.0
    %2006 = vmatpush1.msra.mxu0 0.0
    %2007 = vmatprep.subr.mxu0 0.0
    %2008 = vmatpush1.msra.mxu0 0.0
    %2009 = vmatprep.subr.mxu0 0.0
    %2010 = vmatpush1.msra.mxu0 0.0
    %2011 = vmatprep.subr.mxu0 0.0
    %2012 = vmatpush1.msra.mxu0 0.0
    %2013 = vmatprep.subr.mxu0 0.0
    %2014 = vmatpush1.msra.mxu0 0.0
    %2015 = vmatprep.subr.mxu0 0.0
    %2016 = vmatpush1.msra.mxu0 0.0
    %2017 = vmatprep.subr.mxu0 0.0
    %2018 = vmatpush1.msra.mxu0 0.0
    %2019 = vmatprep.subr.mxu0 0.0
    %2020 = vmatpush1.msra.mxu0 %v1364
    %2021 = vmatprep.subr.mxu0 0.0
    %2022 = vmatpush1.msra.mxu0 %v1363
    %2023 = vmatprep.subr.mxu0 0.0
    %2024 = vmatpush1.msra.mxu0 %v1362
    %2025 = vmatprep.subr.mxu0 0.0
    %2026 = vmatpush1.msra.mxu0 %v1361
    %2027 = vmatprep.subr.mxu0 0.0
    %2028 = vmatpush2.msra.mxu0 0.0
    %2029 = vmatprep.subr.mxu0 0.0
    %2030 = vmatpush2.msra.mxu0 0.0
    %2031 = vmatprep.subr.mxu0 0.0
    %2032 = vmatpush2.msra.mxu0 0.0
    %2033 = vmatprep.subr.mxu0 0.0
    %2034 = vmatpush2.msra.mxu0 0.0
    %2035 = vmatprep.subr.mxu0 0.0
    %2036 = vmatpush2.msra.mxu0 0.0
    %2037 = vmatprep.subr.mxu0 0.0
    %2038 = vmatpush2.msra.mxu0 0.0
    %2039 = vmatprep.subr.mxu0 0.0
    %2040 = vmatpush2.msra.mxu0 0.0
    %2041 = vmatprep.subr.mxu0 0.0
    %2042 = vmatpush2.msra.mxu0 0.0
    %2043 = vmatprep.subr.mxu0 0.0
    %2044 = vmatpush2.msra.mxu0 0.0
    %2045 = vmatprep.subr.mxu0 0.0
    %2046 = vmatpush2.msra.mxu0 0.0
    %2047 = vmatprep.subr.mxu0 0.0
    %2048 = vmatpush2.msra.mxu0 0.0
    %2049 = vmatprep.subr.mxu0 0.0
    %2050 = vmatpush2.msra.mxu0 0.0
    %2051 = vmatprep.subr.mxu0 0.0
    %2052 = vmatpush2.msra.mxu0 0.0
    %2053 = vmatprep.subr.mxu0 0.0
    %2054 = vmatpush2.msra.mxu0 0.0
    %2055 = vmatprep.subr.mxu0 0.0
    %2056 = vmatpush2.msra.mxu0 0.0
    %2057 = vmatprep.subr.mxu0 0.0
    %2058 = vmatpush2.msra.mxu0 0.0
    %2059 = vmatprep.mubr.f32.mxu0 0.0
    %2060 = vmatmul.mubr.f32.gmra.mxu0 %v1993
    %v2061 = vpop.f32.mrf.mxu0
    %v2062 = vadd.f32 0.0, %v2061
    %v2063 = vpop.f32.mrf.mxu0
    %2064 = vdwg.mxu0
    %v2066 = vrot.slane %v2062, 6
    %v2068 = vadd.f32 %v1452, %v2066
    %v2069 = vxor.u32 %v2068, 2147483648
    %v2070 = vmul.f32 %v2069, 1.442695
    %v2071 = vpow.pop %v2070
    %v2072 = vadd.f32 %v2071, 1.0
    %v2073 = vrcp.pop %v2072
    %v2074 = vmul.f32 1.0, %v2073
    %v2075 = vtanh.pop %v2068
    %v2077 = vrot.slane %v1981, 6
    %v2079 = vmul.f32 %v2074, %v2077
    %2081 = vrot.lane.b32.xlu0 %v2075, 64
    %v2082 = vpop.permute.xlu0 %2081
    %v2084 = vmul.f32 %v2074, %v2082
    %2086 = vrot.lane.b32.xlu0 %v2084, 32
    %v2087 = vpop.permute.xlu0 %2086
    %v2089 = vadd.f32 %v2079, %v2087
    %v2090 = vtanh.pop %v2089
    %2092 = vrot.lane.b32.xlu0 %v2090, 64
    %v2093 = vpop.permute.xlu0 %2092
    %v2095 = vmul.f32 %v2074, %v2093
    %2097 = vrot.lane.b32.xlu0 %v2095, 32
    %v2098 = vpop.permute.xlu0 %2097
    %2100 = vst.msk [vmem:[#allocation2 + $0x8] sm:$0xc] %vm612, %v2098
    %v2101 = vrot.slane %v2095, 2
    %2102 = vrot.lane.b32.xlu0 %v2101, 32
    %v2103 = vpop.permute.xlu0 %2102
    %v2104 = vsel %vm106, %v2103, 0
    %2106 = vmatprep.subr.mxu0 0.0
    %2107 = vmatpush1.msra.mxu0 0.0
    %2108 = vmatprep.subr.mxu0 0.0
    %2109 = vmatpush1.msra.mxu0 0.0
    %2110 = vmatprep.subr.mxu0 0.0
    %2111 = vmatpush1.msra.mxu0 0.0
    %2112 = vmatprep.subr.mxu0 0.0
    %2113 = vmatpush1.msra.mxu0 0.0
    %2114 = vmatprep.subr.mxu0 0.0
    %2115 = vmatpush1.msra.mxu0 0.0
    %2116 = vmatprep.subr.mxu0 0.0
    %2117 = vmatpush1.msra.mxu0 0.0
    %2118 = vmatprep.subr.mxu0 0.0
    %2119 = vmatpush1.msra.mxu0 0.0
    %2120 = vmatprep.subr.mxu0 0.0
    %2121 = vmatpush1.msra.mxu0 0.0
    %2122 = vmatprep.subr.mxu0 0.0
    %2123 = vmatpush1.msra.mxu0 0.0
    %2124 = vmatprep.subr.mxu0 0.0
    %2125 = vmatpush1.msra.mxu0 0.0
    %2126 = vmatprep.subr.mxu0 0.0
    %2127 = vmatpush1.msra.mxu0 0.0
    %2128 = vmatprep.subr.mxu0 0.0
    %2129 = vmatpush1.msra.mxu0 0.0
    %2130 = vmatprep.subr.mxu0 0.0
    %2131 = vmatpush1.msra.mxu0 %v1364
    %2132 = vmatprep.subr.mxu0 0.0
    %2133 = vmatpush1.msra.mxu0 %v1363
    %2134 = vmatprep.subr.mxu0 0.0
    %2135 = vmatpush1.msra.mxu0 %v1362
    %2136 = vmatprep.subr.mxu0 0.0
    %2137 = vmatpush1.msra.mxu0 %v1361
    %2138 = vmatprep.subr.mxu0 0.0
    %2139 = vmatpush2.msra.mxu0 0.0
    %2140 = vmatprep.subr.mxu0 0.0
    %2141 = vmatpush2.msra.mxu0 0.0
    %2142 = vmatprep.subr.mxu0 0.0
    %2143 = vmatpush2.msra.mxu0 0.0
    %2144 = vmatprep.subr.mxu0 0.0
    %2145 = vmatpush2.msra.mxu0 0.0
    %2146 = vmatprep.subr.mxu0 0.0
    %2147 = vmatpush2.msra.mxu0 0.0
    %2148 = vmatprep.subr.mxu0 0.0
    %2149 = vmatpush2.msra.mxu0 0.0
    %2150 = vmatprep.subr.mxu0 0.0
    %2151 = vmatpush2.msra.mxu0 0.0
    %2152 = vmatprep.subr.mxu0 0.0
    %2153 = vmatpush2.msra.mxu0 0.0
    %2154 = vmatprep.subr.mxu0 0.0
    %2155 = vmatpush2.msra.mxu0 0.0
    %2156 = vmatprep.subr.mxu0 0.0
    %2157 = vmatpush2.msra.mxu0 0.0
    %2158 = vmatprep.subr.mxu0 0.0
    %2159 = vmatpush2.msra.mxu0 0.0
    %2160 = vmatprep.subr.mxu0 0.0
    %2161 = vmatpush2.msra.mxu0 0.0
    %2162 = vmatprep.subr.mxu0 0.0
    %2163 = vmatpush2.msra.mxu0 0.0
    %2164 = vmatprep.subr.mxu0 0.0
    %2165 = vmatpush2.msra.mxu0 0.0
    %2166 = vmatprep.subr.mxu0 0.0
    %2167 = vmatpush2.msra.mxu0 0.0
    %2168 = vmatprep.subr.mxu0 0.0
    %2169 = vmatpush2.msra.mxu0 0.0
    %2170 = vmatprep.mubr.f32.mxu0 0.0
    %2171 = vmatmul.mubr.f32.gmra.mxu0 %v2104
    %v2172 = vpop.f32.mrf.mxu0
    %v2173 = vadd.f32 0.0, %v2172
    %v2174 = vpop.f32.mrf.mxu0
    %2175 = vdwg.mxu0
    %v2177 = vrot.slane %v2173, 4
    %v2179 = vadd.f32 %v1452, %v2177
    %v2180 = vxor.u32 %v2179, 2147483648
    %v2181 = vmul.f32 %v2180, 1.442695
    %v2182 = vpow.pop %v2181
    %v2183 = vadd.f32 %v2182, 1.0
    %v2184 = vrcp.pop %v2183
    %v2185 = vmul.f32 1.0, %v2184
    %v2186 = vtanh.pop %v2179
    %v2188 = vrot.slane %v2089, 6
    %v2190 = vmul.f32 %v2185, %v2188
    %2192 = vrot.lane.b32.xlu0 %v2186, 64
    %v2193 = vpop.permute.xlu0 %2192
    %v2195 = vmul.f32 %v2185, %v2193
    %2197 = vrot.lane.b32.xlu0 %v2195, 32
    %v2198 = vpop.permute.xlu0 %2197
    %v2200 = vadd.f32 %v2190, %v2198
    %v2201 = vtanh.pop %v2200
    %2203 = vrot.lane.b32.xlu0 %v2201, 64
    %v2204 = vpop.permute.xlu0 %2203
    %v2206 = vmul.f32 %v2185, %v2204
    %2208 = vrot.lane.b32.xlu0 %v2206, 32
    %v2209 = vpop.permute.xlu0 %2208
    %2211 = vst.msk [vmem:[#allocation2 + $0x8] sm:$0x30] %vm908, %v2209
    %v2212 = vrot.slane %v2206, 4
    %2213 = vrot.lane.b32.xlu0 %v2212, 32
    %v2214 = vpop.permute.xlu0 %2213
    %v2215 = vsel %vm106, %v2214, 0
    %2217 = vmatprep.subr.mxu0 0.0
    %2218 = vmatpush1.msra.mxu0 0.0
    %2219 = vmatprep.subr.mxu0 0.0
    %2220 = vmatpush1.msra.mxu0 0.0
    %2221 = vmatprep.subr.mxu0 0.0
    %2222 = vmatpush1.msra.mxu0 0.0
    %2223 = vmatprep.subr.mxu0 0.0
    %2224 = vmatpush1.msra.mxu0 0.0
    %2225 = vmatprep.subr.mxu0 0.0
    %2226 = vmatpush1.msra.mxu0 0.0
    %2227 = vmatprep.subr.mxu0 0.0
    %2228 = vmatpush1.msra.mxu0 0.0
    %2229 = vmatprep.subr.mxu0 0.0
    %2230 = vmatpush1.msra.mxu0 0.0
    %2231 = vmatprep.subr.mxu0 0.0
    %2232 = vmatpush1.msra.mxu0 0.0
    %2233 = vmatprep.subr.mxu0 0.0
    %2234 = vmatpush1.msra.mxu0 0.0
    %2235 = vmatprep.subr.mxu0 0.0
    %2236 = vmatpush1.msra.mxu0 0.0
    %2237 = vmatprep.subr.mxu0 0.0
    %2238 = vmatpush1.msra.mxu0 0.0
    %2239 = vmatprep.subr.mxu0 0.0
    %2240 = vmatpush1.msra.mxu0 0.0
    %2241 = vmatprep.subr.mxu0 0.0
    %2242 = vmatpush1.msra.mxu0 %v1364
    %2243 = vmatprep.subr.mxu0 0.0
    %2244 = vmatpush1.msra.mxu0 %v1363
    %2245 = vmatprep.subr.mxu0 0.0
    %2246 = vmatpush1.msra.mxu0 %v1362
    %2247 = vmatprep.subr.mxu0 0.0
    %2248 = vmatpush1.msra.mxu0 %v1361
    %2249 = vmatprep.subr.mxu0 0.0
    %2250 = vmatpush2.msra.mxu0 0.0
    %2251 = vmatprep.subr.mxu0 0.0
    %2252 = vmatpush2.msra.mxu0 0.0
    %2253 = vmatprep.subr.mxu0 0.0
    %2254 = vmatpush2.msra.mxu0 0.0
    %2255 = vmatprep.subr.mxu0 0.0
    %2256 = vmatpush2.msra.mxu0 0.0
    %2257 = vmatprep.subr.mxu0 0.0
    %2258 = vmatpush2.msra.mxu0 0.0
    %2259 = vmatprep.subr.mxu0 0.0
    %2260 = vmatpush2.msra.mxu0 0.0
    %2261 = vmatprep.subr.mxu0 0.0
    %2262 = vmatpush2.msra.mxu0 0.0
    %2263 = vmatprep.subr.mxu0 0.0
    %2264 = vmatpush2.msra.mxu0 0.0
    %2265 = vmatprep.subr.mxu0 0.0
    %2266 = vmatpush2.msra.mxu0 0.0
    %2267 = vmatprep.subr.mxu0 0.0
    %2268 = vmatpush2.msra.mxu0 0.0
    %2269 = vmatprep.subr.mxu0 0.0
    %2270 = vmatpush2.msra.mxu0 0.0
    %2271 = vmatprep.subr.mxu0 0.0
    %2272 = vmatpush2.msra.mxu0 0.0
    %2273 = vmatprep.subr.mxu0 0.0
    %2274 = vmatpush2.msra.mxu0 0.0
    %2275 = vmatprep.subr.mxu0 0.0
    %2276 = vmatpush2.msra.mxu0 0.0
    %2277 = vmatprep.subr.mxu0 0.0
    %2278 = vmatpush2.msra.mxu0 0.0
    %2279 = vmatprep.subr.mxu0 0.0
    %2280 = vmatpush2.msra.mxu0 0.0
    %2281 = vmatprep.mubr.f32.mxu0 0.0
    %2282 = vmatmul.mubr.f32.gmra.mxu0 %v2215
    %v2283 = vpop.f32.mrf.mxu0
    %v2284 = vadd.f32 0.0, %v2283
    %v2285 = vpop.f32.mrf.mxu0
    %2286 = vdwg.mxu0
    %v2288 = vrot.slane %v2284, 2
    %v2290 = vadd.f32 %v1452, %v2288
    %v2291 = vxor.u32 %v2290, 2147483648
    %v2292 = vmul.f32 %v2291, 1.442695
    %v2293 = vpow.pop %v2292
    %v2294 = vadd.f32 %v2293, 1.0
    %v2295 = vrcp.pop %v2294
    %v2296 = vmul.f32 1.0, %v2295
    %v2297 = vtanh.pop %v2290
    %v2299 = vrot.slane %v2200, 6
    %v2301 = vmul.f32 %v2296, %v2299
    %2303 = vrot.lane.b32.xlu0 %v2297, 64
    %v2304 = vpop.permute.xlu0 %2303
    %v2306 = vmul.f32 %v2296, %v2304
    %2308 = vrot.lane.b32.xlu0 %v2306, 32
    %v2309 = vpop.permute.xlu0 %2308
    %v2311 = vadd.f32 %v2301, %v2309
    %v2312 = vtanh.pop %v2311
    %2314 = vrot.lane.b32.xlu0 %v2312, 64
    %v2315 = vpop.permute.xlu0 %2314
    %v2317 = vmul.f32 %v2296, %v2315
    %2319 = vrot.lane.b32.xlu0 %v2317, 32
    %v2320 = vpop.permute.xlu0 %2319
    %2322 = vst.msk [vmem:[#allocation2 + $0x8] sm:$0xc0] %vm1204, %v2320
    %v2323 = vld [vmem:[#allocation2] ss:$2 sm:$0xff]
    %s2324 = scalar_lea.vmem [#allocation2], 1
    %v2325 = vld [vmem:[%s2324] ss:$2 sm:$0xff]
    %v2326 = vld [vmem:[%s7] sm:$0xff]
    %v2327 = vld [vmem:[%s7 + $0x8] sm:$0xff]
    %v2328 = vld [vmem:[%s7 + $0x10] sm:$0xff]
    %v2329 = vld [vmem:[%s7 + $0x18] sm:$0xff]
    %v2330 = vld [vmem:[#allocation3] sm:$0x1]
    %v2332 = vlaneseq
    %v2333 = vshrl.u32 %v2332, 7
    %v2334 = vsub.s32 0, %v2333
    %v2335 = vrot.slane %v2330, %v2334
    %v2338 = vsel %vm106, %v2323, 0
    %v2341 = vsel %vm106, %v2325, 0
    %2343 = vmatprep.subr.mxu0 0.0
    %2344 = vmatpush1.msra.mxu0 0.0
    %2345 = vmatprep.subr.mxu0 0.0
    %2346 = vmatpush1.msra.mxu0 0.0
    %2347 = vmatprep.subr.mxu0 0.0
    %2348 = vmatpush1.msra.mxu0 0.0
    %2349 = vmatprep.subr.mxu0 0.0
    %2350 = vmatpush1.msra.mxu0 0.0
    %2351 = vmatprep.subr.mxu0 0.0
    %2352 = vmatpush1.msra.mxu0 0.0
    %2353 = vmatprep.subr.mxu0 0.0
    %2354 = vmatpush1.msra.mxu0 0.0
    %2355 = vmatprep.subr.mxu0 0.0
    %2356 = vmatpush1.msra.mxu0 0.0
    %2357 = vmatprep.subr.mxu0 0.0
    %2358 = vmatpush1.msra.mxu0 0.0
    %2359 = vmatprep.subr.mxu0 0.0
    %2360 = vmatpush1.msra.mxu0 0.0
    %2361 = vmatprep.subr.mxu0 0.0
    %2362 = vmatpush1.msra.mxu0 0.0
    %2363 = vmatprep.subr.mxu0 0.0
    %2364 = vmatpush1.msra.mxu0 0.0
    %2365 = vmatprep.subr.mxu0 0.0
    %2366 = vmatpush1.msra.mxu0 0.0
    %2367 = vmatprep.subr.mxu0 0.0
    %2368 = vmatpush1.msra.mxu0 %v2329
    %2369 = vmatprep.subr.mxu0 0.0
    %2370 = vmatpush1.msra.mxu0 %v2328
    %2371 = vmatprep.subr.mxu0 0.0
    %2372 = vmatpush1.msra.mxu0 %v2327
    %2373 = vmatprep.subr.mxu0 0.0
    %2374 = vmatpush1.msra.mxu0 %v2326
    %2375 = vmatprep.subr.mxu0 0.0
    %2376 = vmatpush2.msra.mxu0 0.0
    %2377 = vmatprep.subr.mxu0 0.0
    %2378 = vmatpush2.msra.mxu0 0.0
    %2379 = vmatprep.subr.mxu0 0.0
    %2380 = vmatpush2.msra.mxu0 0.0
    %2381 = vmatprep.subr.mxu0 0.0
    %2382 = vmatpush2.msra.mxu0 0.0
    %2383 = vmatprep.subr.mxu0 0.0
    %2384 = vmatpush2.msra.mxu0 0.0
    %2385 = vmatprep.subr.mxu0 0.0
    %2386 = vmatpush2.msra.mxu0 0.0
    %2387 = vmatprep.subr.mxu0 0.0
    %2388 = vmatpush2.msra.mxu0 0.0
    %2389 = vmatprep.subr.mxu0 0.0
    %2390 = vmatpush2.msra.mxu0 0.0
    %2391 = vmatprep.subr.mxu0 0.0
    %2392 = vmatpush2.msra.mxu0 0.0
    %2393 = vmatprep.subr.mxu0 0.0
    %2394 = vmatpush2.msra.mxu0 0.0
    %2395 = vmatprep.subr.mxu0 0.0
    %2396 = vmatpush2.msra.mxu0 0.0
    %2397 = vmatprep.subr.mxu0 0.0
    %2398 = vmatpush2.msra.mxu0 0.0
    %2399 = vmatprep.subr.mxu0 0.0
    %2400 = vmatpush2.msra.mxu0 0.0
    %2401 = vmatprep.subr.mxu0 0.0
    %2402 = vmatpush2.msra.mxu0 0.0
    %2403 = vmatprep.subr.mxu0 0.0
    %2404 = vmatpush2.msra.mxu0 0.0
    %2405 = vmatprep.subr.mxu0 0.0
    %2406 = vmatpush2.msra.mxu0 0.0
    %2407 = vmatprep.mubr.f32.mxu0 0.0
    %2408 = vmatmul.mubr.f32.gmra.mxu0 %v2338
    %v2409 = vpop.f32.mrf.mxu0
    %v2410 = vadd.f32 %v2335, %v2409
    %v2411 = vpop.f32.mrf.mxu0
    %2412 = vmatprep.mubr.f32.mxu0 0.0
    %2413 = vmatmul.mubr.f32.gmra.mxu0 %v2341
    %v2414 = vpop.f32.mrf.mxu0
    %v2415 = vadd.f32 %v2335, %v2414
    %v2416 = vpop.f32.mrf.mxu0
    %2417 = vdwg.mxu0
    %vm2418 = vcmp.ge.f32.partialorder %v2410, 0.0
    %vm2419 = vcmp.ge.f32.partialorder %v2415, 0.0
    %v2420 = vmul.f32 %v2410, 0.2
    %v2421 = vmul.f32 %v2415, 0.2
    %v2422 = vsel %vm2418, %v2410, %v2420
    %v2423 = vsel %vm2419, %v2415, %v2421
    %vm2424 = vcmask 7168
    %2425 = vst.msk [vmem:[%s9] sm:$0xff] %vm2424, %v2422
    %2426 = vst.msk [vmem:[%s9 + $0x8] sm:$0xff] %vm2424, %v2423
    // Predicated region
    $region54: #{tpu_custom_call.1} parent=1 // pred_check
      _
    $region55: #{tpu_custom_call.1} parent=1 // pred_check_branch
      %2428 = sbr.rel (0) target = $region57
    $region56: #{tpu_custom_call.1} parent=1 // pred_region
      _
    $region57: #{tpu_custom_call.1} parent=1 // pred_fallthru
      _
    // Predicated region
    $region58: #{tpu_custom_call.1} parent=1 // pred_check
      _
    $region59: #{tpu_custom_call.1} parent=1 // pred_check_branch
      %2430 = sbr.rel (0) target = $region61
    $region60: #{tpu_custom_call.1} parent=1 // pred_region
      _
    $region61: #{tpu_custom_call.1} parent=1 // pred_fallthru
      _
    %2431 = vsyncpa [#allocation5], 1
    %2432 = vsyncpa [#allocation7], 1
    %2433 = vsyncpa [#allocation10], 1

</llo_original>
